<compile_context>
chip_gen: v5e
topology: v5e:2x2
jax: 0.10.0
libtpu: 0.0.40
codegen_flags: <defaults>
</compile_context>

<pallas_src>
import functools
import math

import jax
import jax.numpy as jnp
from jax.experimental import pallas as pl
from jax.experimental.pallas import tpu as pltpu

# ---- model config ----
PATCH = 16
IMG = 32
IN_CH = 3
HIDDEN = 32
HEADS = 4
HEAD_DIM = HIDDEN // HEADS
MLP_DIM = 64
LAYERS = 2
LN_EPS = 1e-6  # torchvision ViT uses LayerNorm(eps=1e-6)


# ------------------ fused Pallas kernel ------------------
def _fused_vit_kernel(
    patches_ref, conv_w_ref, conv_b_ref, cls_ref, pos_ref, mask_ref,
    ln1_g_ref, ln1_b_ref, w_qkv_ref, b_qkv_ref, w_o_ref, b_o_ref,
    ln2_g_ref, ln2_b_ref, w1_ref, b1_ref, w2_ref, b2_ref,
    lnf_g_ref, lnf_b_ref, head_w_ref, head_b_ref,
    out_ref, x_scratch,
    *, batch, seq, n_patches, layers, heads, head_dim, hidden, eps):
  f32 = jnp.float32

  def layer_norm(x, g, b):
    mean = jnp.mean(x, axis=-1, keepdims=True)
    var = jnp.mean(jnp.square(x - mean), axis=-1, keepdims=True)
    return (x - mean) * jax.lax.rsqrt(var + eps) * g + b

  # ---- patch embedding (conv_proj with kernel == stride == patch) ----
  tok = (jnp.dot(patches_ref[...], conv_w_ref[...], preferred_element_type=f32)
         + conv_b_ref[...])                                  # (B*n_patches, HIDDEN)

  # ---- prepend class token per image and add positional embedding ----
  cls = cls_ref[...] + pos_ref[pl.ds(0, 1), :]               # (1, HIDDEN)
  pos_patches = pos_ref[pl.ds(1, n_patches), :]              # (n_patches, HIDDEN)
  for b in range(batch):
    x_scratch[pl.ds(b * seq, 1), :] = cls
    x_scratch[pl.ds(b * seq + 1, n_patches), :] = (
        tok[b * n_patches:(b + 1) * n_patches, :] + pos_patches)
  x = x_scratch[...]                                         # (B*seq, HIDDEN)

  attn_bias = mask_ref[...]                                  # (B*seq, B*seq), 0 / -1e30
  scale = 1.0 / math.sqrt(head_dim)
  inv_sqrt2 = 1.0 / math.sqrt(2.0)

  # TODO(synk): dropout layers omitted — vit_b_16 defaults to p=0.0 (identity in eval).
  for li in range(layers):          # static unroll; weights stay VMEM-resident
    # --- self-attention block (pre-LN) ---
    y = layer_norm(x, ln1_g_ref[pl.ds(li, 1), :], ln1_b_ref[pl.ds(li, 1), :])
    qkv = (jnp.dot(y, w_qkv_ref[li], preferred_element_type=f32)
           + b_qkv_ref[pl.ds(li, 1), :])                     # (B*seq, 3*HIDDEN)

    head_outs = []
    for h in range(heads):          # all heads in one kernel body, no grid
      q = qkv[:, h * head_dim:(h + 1) * head_dim]
      k = qkv[:, hidden + h * head_dim: hidden + (h + 1) * head_dim]
      v = qkv[:, 2 * hidden + h * head_dim: 2 * hidden + (h + 1) * head_dim]
      # contract last dims directly (no explicit transpose of k)
      s = jax.lax.dot_general(q, k, (((1,), (1,)), ((), ())),
                              preferred_element_type=f32) * scale
      s = s + attn_bias             # block-diagonal: no cross-image attention
      s = s - jnp.max(s, axis=-1, keepdims=True)
      p = jnp.exp(s)
      p = p * pl.reciprocal(jnp.sum(p, axis=-1, keepdims=True), approx=True)
      head_outs.append(jnp.dot(p, v, preferred_element_type=f32))
    attn = jnp.concatenate(head_outs, axis=-1)               # (B*seq, HIDDEN)
    attn = (jnp.dot(attn, w_o_ref[li], preferred_element_type=f32)
            + b_o_ref[pl.ds(li, 1), :])
    x = x + attn

    # --- MLP block (pre-LN, exact erf GELU) ---
    z = layer_norm(x, ln2_g_ref[pl.ds(li, 1), :], ln2_b_ref[pl.ds(li, 1), :])
    h1 = (jnp.dot(z, w1_ref[li], preferred_element_type=f32)
          + b1_ref[pl.ds(li, 1), :])
    h1 = 0.5 * h1 * (1.0 + jax.lax.erf(h1 * inv_sqrt2))
    h2 = (jnp.dot(h1, w2_ref[li], preferred_element_type=f32)
          + b2_ref[pl.ds(li, 1), :])
    x = x + h2

  # ---- final LN + regression head fused as a row reduction (no N=1 matmul) ----
  x = layer_norm(x, lnf_g_ref[...], lnf_b_ref[...])
  head_w = head_w_ref[...]                                   # (1, HIDDEN)
  head_b = head_b_ref[...]                                   # (1, 1)
  for b in range(batch):
    cls_row = x[b * seq:b * seq + 1, :]                      # class token of image b
    out_ref[pl.ds(b, 1), :] = (
        jnp.sum(cls_row * head_w, axis=-1, keepdims=True) + head_b)


# ------------------ parameters ------------------
def init_params(key):
  n_patches = (IMG // PATCH) ** 2
  seq = n_patches + 1
  ks = jax.random.split(key, 4)

  def nrm(k, shape, std=0.02):
    return std * jax.random.normal(k, shape, jnp.float32)

  per_layer = []
  for li in range(LAYERS):
    lk = jax.random.split(jax.random.fold_in(key, 100 + li), 4)
    per_layer.append({
        "ln1_g": jnp.ones((HIDDEN,), jnp.float32),
        "ln1_b": jnp.zeros((HIDDEN,), jnp.float32),
        "w_qkv": nrm(lk[0], (HIDDEN, 3 * HIDDEN)),
        "b_qkv": jnp.zeros((3 * HIDDEN,), jnp.float32),
        "w_o": nrm(lk[1], (HIDDEN, HIDDEN)),
        "b_o": jnp.zeros((HIDDEN,), jnp.float32),
        "ln2_g": jnp.ones((HIDDEN,), jnp.float32),
        "ln2_b": jnp.zeros((HIDDEN,), jnp.float32),
        "w_1": nrm(lk[2], (HIDDEN, MLP_DIM)),
        "b_1": jnp.zeros((MLP_DIM,), jnp.float32),
        "w_2": nrm(lk[3], (MLP_DIM, HIDDEN)),
        "b_2": jnp.zeros((HIDDEN,), jnp.float32),
    })
  # stack per-layer params along a leading LAYERS axis -> single VMEM residency
  layers = {k: jnp.stack([lp[k] for lp in per_layer], axis=0)
            for k in per_layer[0]}

  return {
      # conv_proj weight (E, C, p, p) flattened + transposed -> (C*p*p, E)
      "conv_w": nrm(ks[0], (IN_CH * PATCH * PATCH, HIDDEN)),
      "conv_b": jnp.zeros((HIDDEN,), jnp.float32),
      "cls_token": nrm(ks[1], (1, 1, HIDDEN)),
      "pos_emb": nrm(ks[2], (1, seq, HIDDEN)),
      "ln_f_g": jnp.ones((HIDDEN,), jnp.float32),
      "ln_f_b": jnp.zeros((HIDDEN,), jnp.float32),
      "head_w": nrm(ks[3], (HIDDEN, 1)),   # regression head: Linear(hidden, 1)
      "head_b": jnp.zeros((1,), jnp.float32),
      "layers": layers,
  }


# ------------------ forward pass (single fused pallas_call) ------------------
def vit_regressor_forward(images, params):
  B, C, H, W = images.shape
  p = PATCH
  hp, wp = H // p, W // p
  n_patches = hp * wp
  seq = n_patches + 1
  bs = B * seq

  # conv_proj (kernel=stride=patch) == per-patch flatten (c, ph, pw order);
  # TODO(synk): at real ViT-B sizes fuse this relayout into the kernel via a
  # (B, hp, wp) grid + index_map; at 32x32 it is a single cheap XLA op.
  patches = (images.reshape(B, C, hp, p, wp, p)
                   .transpose(0, 2, 4, 1, 3, 5)
                   .reshape(B * n_patches, C * p * p))

  # additive attention bias: 0 within an image, -1e30 across images
  img_id = jnp.arange(bs, dtype=jnp.int32) // seq
  attn_bias = jnp.where(img_id[:, None] == img_id[None, :],
                        0.0, -1e30).astype(jnp.float32)

  L = params["layers"]
  vmem = pl.BlockSpec(memory_space=pltpu.MemorySpace.VMEM)
  kernel = functools.partial(
      _fused_vit_kernel, batch=B, seq=seq, n_patches=n_patches,
      layers=LAYERS, heads=HEADS, head_dim=HEAD_DIM, hidden=HIDDEN, eps=LN_EPS)

  return pl.pallas_call(
      kernel,
      out_shape=jax.ShapeDtypeStruct((B, 1), jnp.float32),
      in_specs=[vmem] * 22,
      out_specs=vmem,
      scratch_shapes=[pltpu.VMEM((bs, HIDDEN), jnp.float32)],
  )(patches,
    params["conv_w"], params["conv_b"].reshape(1, HIDDEN),
    params["cls_token"].reshape(1, HIDDEN), params["pos_emb"].reshape(seq, HIDDEN),
    attn_bias,
    L["ln1_g"], L["ln1_b"], L["w_qkv"], L["b_qkv"], L["w_o"], L["b_o"],
    L["ln2_g"], L["ln2_b"], L["w_1"], L["b_1"], L["w_2"], L["b_2"],
    params["ln_f_g"].reshape(1, HIDDEN), params["ln_f_b"].reshape(1, HIDDEN),
    params["head_w"].reshape(1, HIDDEN), params["head_b"].reshape(1, 1))


if __name__ == "__main__":
  key = jax.random.PRNGKey(0)
  pkey, xkey = jax.random.split(key)
  params = init_params(pkey)
  images = jax.random.normal(xkey, (2, IN_CH, IMG, IMG), jnp.float32)

  out = jax.jit(vit_regressor_forward)(images, params)
  out = jax.block_until_ready(out)
  assert out.shape == (2, 1) and out.dtype == jnp.float32
  print("KERNEL_OK")
</pallas_src>

<mosaic_0001>
module attributes {stable_mosaic.version = 11 : i64} {
  func.func @_fused_vit_kernel(%arg0: memref<8x768xf32, #tpu.memory_space<vmem>>, %arg1: memref<768x32xf32, #tpu.memory_space<vmem>>, %arg2: memref<1x32xf32, #tpu.memory_space<vmem>>, %arg3: memref<1x32xf32, #tpu.memory_space<vmem>>, %arg4: memref<5x32xf32, #tpu.memory_space<vmem>>, %arg5: memref<10x10xf32, #tpu.memory_space<vmem>>, %arg6: memref<2x32xf32, #tpu.memory_space<vmem>>, %arg7: memref<2x32xf32, #tpu.memory_space<vmem>>, %arg8: memref<2x32x96xf32, #tpu.memory_space<vmem>>, %arg9: memref<2x96xf32, #tpu.memory_space<vmem>>, %arg10: memref<2x32x32xf32, #tpu.memory_space<vmem>>, %arg11: memref<2x32xf32, #tpu.memory_space<vmem>>, %arg12: memref<2x32xf32, #tpu.memory_space<vmem>>, %arg13: memref<2x32xf32, #tpu.memory_space<vmem>>, %arg14: memref<2x32x64xf32, #tpu.memory_space<vmem>>, %arg15: memref<2x64xf32, #tpu.memory_space<vmem>>, %arg16: memref<2x64x32xf32, #tpu.memory_space<vmem>>, %arg17: memref<2x32xf32, #tpu.memory_space<vmem>>, %arg18: memref<1x32xf32, #tpu.memory_space<vmem>>, %arg19: memref<1x32xf32, #tpu.memory_space<vmem>>, %arg20: memref<1x32xf32, #tpu.memory_space<vmem>>, %arg21: memref<1x1xf32, #tpu.memory_space<vmem>>, %arg22: memref<2x1xf32, #tpu.memory_space<vmem>>, %arg23: memref<10x32xf32, #tpu.memory_space<vmem>>) attributes {dimension_semantics = [], scalar_prefetch = 0 : i64, scratch_operands = 1 : i64, tpu.core_type = #tpu.core_type<tc>} {
    %c0 = arith.constant 0 : index
    %c0_0 = arith.constant 0 : index
    %0 = vector.load %arg0[%c0, %c0_0] : memref<8x768xf32, #tpu.memory_space<vmem>>, vector<8x768xf32>
    %c0_1 = arith.constant 0 : index
    %c0_2 = arith.constant 0 : index
    %1 = vector.load %arg1[%c0_1, %c0_2] : memref<768x32xf32, #tpu.memory_space<vmem>>, vector<768x32xf32>
    %cst = arith.constant dense<0.000000e+00> : vector<8x32xf32>
    %2 = tpu.matmul %0, %1, %cst {dimension_numbers = #tpu.dot_dimension_numbers<[1], [0], [0], [1], [0, 0, 1, 1], [], []>} : vector<8x768xf32>, vector<768x32xf32>, vector<8x32xf32> -> vector<8x32xf32>
    %c0_3 = arith.constant 0 : index
    %c0_4 = arith.constant 0 : index
    %3 = vector.load %arg2[%c0_3, %c0_4] : memref<1x32xf32, #tpu.memory_space<vmem>>, vector<1x32xf32>
    %4 = vector.broadcast %3 : vector<1x32xf32> to vector<8x32xf32>
    %5 = arith.addf %2, %4 : vector<8x32xf32>
    %c0_5 = arith.constant 0 : index
    %c0_6 = arith.constant 0 : index
    %6 = vector.load %arg3[%c0_5, %c0_6] : memref<1x32xf32, #tpu.memory_space<vmem>>, vector<1x32xf32>
    %c0_7 = arith.constant 0 : index
    %c0_8 = arith.constant 0 : index
    %7 = vector.load %arg4[%c0_7, %c0_8] : memref<5x32xf32, #tpu.memory_space<vmem>>, vector<1x32xf32>
    %8 = arith.addf %6, %7 : vector<1x32xf32>
    %c1 = arith.constant 1 : index
    %c0_9 = arith.constant 0 : index
    %9 = vector.load %arg4[%c1, %c0_9] : memref<5x32xf32, #tpu.memory_space<vmem>>, vector<4x32xf32>
    %c0_10 = arith.constant 0 : index
    %c0_11 = arith.constant 0 : index
    %10 = vector.load %arg23[%c0_10, %c0_11] : memref<10x32xf32, #tpu.memory_space<vmem>>, vector<1x32xf32>
    tpu.vector_store %arg23[%c0_10, %c0_11], %8 {strides = array<i32>} : memref<10x32xf32, #tpu.memory_space<vmem>>, vector<1x32xf32>,
    %11 = vector.extract_strided_slice %5 {offsets = [0, 0], sizes = [4, 32], strides = [1, 1]} : vector<8x32xf32> to vector<4x32xf32>
    %12 = arith.addf %11, %9 : vector<4x32xf32>
    %c1_12 = arith.constant 1 : index
    %c0_13 = arith.constant 0 : index
    %13 = vector.load %arg23[%c1_12, %c0_13] : memref<10x32xf32, #tpu.memory_space<vmem>>, vector<4x32xf32>
    tpu.vector_store %arg23[%c1_12, %c0_13], %12 {strides = array<i32>} : memref<10x32xf32, #tpu.memory_space<vmem>>, vector<4x32xf32>,
    %c5 = arith.constant 5 : index
    %c0_14 = arith.constant 0 : index
    %14 = vector.load %arg23[%c5, %c0_14] : memref<10x32xf32, #tpu.memory_space<vmem>>, vector<1x32xf32>
    tpu.vector_store %arg23[%c5, %c0_14], %8 {strides = array<i32>} : memref<10x32xf32, #tpu.memory_space<vmem>>, vector<1x32xf32>,
    %15 = vector.extract_strided_slice %5 {offsets = [4, 0], sizes = [4, 32], strides = [1, 1]} : vector<8x32xf32> to vector<4x32xf32>
    %16 = arith.addf %15, %9 : vector<4x32xf32>
    %c6 = arith.constant 6 : index
    %c0_15 = arith.constant 0 : index
    %17 = vector.load %arg23[%c6, %c0_15] : memref<10x32xf32, #tpu.memory_space<vmem>>, vector<4x32xf32>
    tpu.vector_store %arg23[%c6, %c0_15], %16 {strides = array<i32>} : memref<10x32xf32, #tpu.memory_space<vmem>>, vector<4x32xf32>,
    %c0_16 = arith.constant 0 : index
    %c0_17 = arith.constant 0 : index
    %18 = vector.load %arg23[%c0_16, %c0_17] : memref<10x32xf32, #tpu.memory_space<vmem>>, vector<10x32xf32>
    %c0_18 = arith.constant 0 : index
    %c0_19 = arith.constant 0 : index
    %19 = vector.load %arg5[%c0_18, %c0_19] : memref<10x10xf32, #tpu.memory_space<vmem>>, vector<10x10xf32>
    %c0_20 = arith.constant 0 : index
    %c0_21 = arith.constant 0 : index
    %20 = vector.load %arg6[%c0_20, %c0_21] : memref<2x32xf32, #tpu.memory_space<vmem>>, vector<1x32xf32>
    %c0_22 = arith.constant 0 : index
    %c0_23 = arith.constant 0 : index
    %21 = vector.load %arg7[%c0_22, %c0_23] : memref<2x32xf32, #tpu.memory_space<vmem>>, vector<1x32xf32>
    %cst_24 = arith.constant dense<0.000000e+00> : vector<10xf32>
    %22 = vector.multi_reduction <add>, %18, %cst_24 [1] : vector<10x32xf32> to vector<10xf32>
    %23 = vector.shape_cast %22 : vector<10xf32> to vector<10x1xf32>
    %cst_25 = arith.constant 3.200000e+01 : f32
    %24 = vector.broadcast %cst_25 : f32 to vector<10x1xf32>
    %25 = arith.divf %23, %24 : vector<10x1xf32>
    %26 = vector.broadcast %25 : vector<10x1xf32> to vector<10x32xf32>
    %27 = arith.subf %18, %26 : vector<10x32xf32>
    %28 = arith.mulf %27, %27 : vector<10x32xf32>
    %cst_26 = arith.constant dense<0.000000e+00> : vector<10xf32>
    %29 = vector.multi_reduction <add>, %28, %cst_26 [1] : vector<10x32xf32> to vector<10xf32>
    %30 = vector.shape_cast %29 : vector<10xf32> to vector<10x1xf32>
    %cst_27 = arith.constant 3.200000e+01 : f32
    %31 = vector.broadcast %cst_27 : f32 to vector<10x1xf32>
    %32 = arith.divf %30, %31 : vector<10x1xf32>
    %33 = vector.broadcast %25 : vector<10x1xf32> to vector<10x32xf32>
    %34 = arith.subf %18, %33 : vector<10x32xf32>
    %cst_28 = arith.constant 9.99999997E-7 : f32
    %35 = vector.broadcast %cst_28 : f32 to vector<10x1xf32>
    %36 = arith.addf %32, %35 : vector<10x1xf32>
    %37 = math.rsqrt %36 : vector<10x1xf32>
    %38 = vector.broadcast %37 : vector<10x1xf32> to vector<10x32xf32>
    %39 = arith.mulf %34, %38 : vector<10x32xf32>
    %40 = vector.broadcast %20 : vector<1x32xf32> to vector<10x32xf32>
    %41 = arith.mulf %39, %40 : vector<10x32xf32>
    %42 = vector.broadcast %21 : vector<1x32xf32> to vector<10x32xf32>
    %43 = arith.addf %41, %42 : vector<10x32xf32>
    %c0_29 = arith.constant 0 : index
    %c0_30 = arith.constant 0 : index
    %c0_31 = arith.constant 0 : index
    %44 = vector.load %arg8[%c0_29, %c0_30, %c0_31] : memref<2x32x96xf32, #tpu.memory_space<vmem>>, vector<1x32x96xf32>
    %45 = vector.shape_cast %44 : vector<1x32x96xf32> to vector<32x96xf32>
    %cst_32 = arith.constant dense<0.000000e+00> : vector<10x96xf32>
    %46 = tpu.matmul %43, %45, %cst_32 {dimension_numbers = #tpu.dot_dimension_numbers<[1], [0], [0], [1], [0, 0, 1, 1], [], []>} : vector<10x32xf32>, vector<32x96xf32>, vector<10x96xf32> -> vector<10x96xf32>
    %c0_33 = arith.constant 0 : index
    %c0_34 = arith.constant 0 : index
    %47 = vector.load %arg9[%c0_33, %c0_34] : memref<2x96xf32, #tpu.memory_space<vmem>>, vector<1x96xf32>
    %48 = vector.broadcast %47 : vector<1x96xf32> to vector<10x96xf32>
    %49 = arith.addf %46, %48 : vector<10x96xf32>
    %50 = vector.extract_strided_slice %49 {offsets = [0, 0], sizes = [10, 8], strides = [1, 1]} : vector<10x96xf32> to vector<10x8xf32>
    %51 = vector.extract_strided_slice %49 {offsets = [0, 32], sizes = [10, 8], strides = [1, 1]} : vector<10x96xf32> to vector<10x8xf32>
    %52 = vector.extract_strided_slice %49 {offsets = [0, 64], sizes = [10, 8], strides = [1, 1]} : vector<10x96xf32> to vector<10x8xf32>
    %cst_35 = arith.constant dense<0.000000e+00> : vector<10x10xf32>
    %53 = tpu.matmul %50, %51, %cst_35 {dimension_numbers = #tpu.dot_dimension_numbers<[1], [1], [0], [0], [0, 0, 1, 0], [], []>} : vector<10x8xf32>, vector<10x8xf32>, vector<10x10xf32> -> vector<10x10xf32>
    %cst_36 = arith.constant 0.353553385 : f32
    %54 = vector.broadcast %cst_36 : f32 to vector<10x10xf32>
    %55 = arith.mulf %53, %54 : vector<10x10xf32>
    %56 = arith.addf %55, %19 : vector<10x10xf32>
    %cst_37 = arith.constant dense<0xFF800000> : vector<10xf32>
    %57 = vector.multi_reduction <maximumf>, %56, %cst_37 [1] : vector<10x10xf32> to vector<10xf32>
    %58 = vector.shape_cast %57 : vector<10xf32> to vector<10x1xf32>
    %59 = vector.broadcast %58 : vector<10x1xf32> to vector<10x10xf32>
    %60 = arith.subf %56, %59 : vector<10x10xf32>
    %61 = math.exp %60 : vector<10x10xf32>
    %cst_38 = arith.constant dense<0.000000e+00> : vector<10xf32>
    %62 = vector.multi_reduction <add>, %61, %cst_38 [1] : vector<10x10xf32> to vector<10xf32>
    %63 = vector.shape_cast %62 : vector<10xf32> to vector<10x1xf32>
    %64 = tpu.reciprocal %63 {approx = true} : vector<10x1xf32> -> vector<10x1xf32>
    %65 = vector.broadcast %64 : vector<10x1xf32> to vector<10x10xf32>
    %66 = arith.mulf %61, %65 : vector<10x10xf32>
    %cst_39 = arith.constant dense<0.000000e+00> : vector<10x8xf32>
    %67 = tpu.matmul %66, %52, %cst_39 {dimension_numbers = #tpu.dot_dimension_numbers<[1], [0], [0], [1], [0, 0, 1, 1], [], []>} : vector<10x10xf32>, vector<10x8xf32>, vector<10x8xf32> -> vector<10x8xf32>
    %68 = vector.extract_strided_slice %49 {offsets = [0, 8], sizes = [10, 8], strides = [1, 1]} : vector<10x96xf32> to vector<10x8xf32>
    %69 = vector.extract_strided_slice %49 {offsets = [0, 40], sizes = [10, 8], strides = [1, 1]} : vector<10x96xf32> to vector<10x8xf32>
    %70 = vector.extract_strided_slice %49 {offsets = [0, 72], sizes = [10, 8], strides = [1, 1]} : vector<10x96xf32> to vector<10x8xf32>
    %cst_40 = arith.constant dense<0.000000e+00> : vector<10x10xf32>
    %71 = tpu.matmul %68, %69, %cst_40 {dimension_numbers = #tpu.dot_dimension_numbers<[1], [1], [0], [0], [0, 0, 1, 0], [], []>} : vector<10x8xf32>, vector<10x8xf32>, vector<10x10xf32> -> vector<10x10xf32>
    %cst_41 = arith.constant 0.353553385 : f32
    %72 = vector.broadcast %cst_41 : f32 to vector<10x10xf32>
    %73 = arith.mulf %71, %72 : vector<10x10xf32>
    %74 = arith.addf %73, %19 : vector<10x10xf32>
    %cst_42 = arith.constant dense<0xFF800000> : vector<10xf32>
    %75 = vector.multi_reduction <maximumf>, %74, %cst_42 [1] : vector<10x10xf32> to vector<10xf32>
    %76 = vector.shape_cast %75 : vector<10xf32> to vector<10x1xf32>
    %77 = vector.broadcast %76 : vector<10x1xf32> to vector<10x10xf32>
    %78 = arith.subf %74, %77 : vector<10x10xf32>
    %79 = math.exp %78 : vector<10x10xf32>
    %cst_43 = arith.constant dense<0.000000e+00> : vector<10xf32>
    %80 = vector.multi_reduction <add>, %79, %cst_43 [1] : vector<10x10xf32> to vector<10xf32>
    %81 = vector.shape_cast %80 : vector<10xf32> to vector<10x1xf32>
    %82 = tpu.reciprocal %81 {approx = true} : vector<10x1xf32> -> vector<10x1xf32>
    %83 = vector.broadcast %82 : vector<10x1xf32> to vector<10x10xf32>
    %84 = arith.mulf %79, %83 : vector<10x10xf32>
    %cst_44 = arith.constant dense<0.000000e+00> : vector<10x8xf32>
    %85 = tpu.matmul %84, %70, %cst_44 {dimension_numbers = #tpu.dot_dimension_numbers<[1], [0], [0], [1], [0, 0, 1, 1], [], []>} : vector<10x10xf32>, vector<10x8xf32>, vector<10x8xf32> -> vector<10x8xf32>
    %86 = vector.extract_strided_slice %49 {offsets = [0, 16], sizes = [10, 8], strides = [1, 1]} : vector<10x96xf32> to vector<10x8xf32>
    %87 = vector.extract_strided_slice %49 {offsets = [0, 48], sizes = [10, 8], strides = [1, 1]} : vector<10x96xf32> to vector<10x8xf32>
    %88 = vector.extract_strided_slice %49 {offsets = [0, 80], sizes = [10, 8], strides = [1, 1]} : vector<10x96xf32> to vector<10x8xf32>
    %cst_45 = arith.constant dense<0.000000e+00> : vector<10x10xf32>
    %89 = tpu.matmul %86, %87, %cst_45 {dimension_numbers = #tpu.dot_dimension_numbers<[1], [1], [0], [0], [0, 0, 1, 0], [], []>} : vector<10x8xf32>, vector<10x8xf32>, vector<10x10xf32> -> vector<10x10xf32>
    %cst_46 = arith.constant 0.353553385 : f32
    %90 = vector.broadcast %cst_46 : f32 to vector<10x10xf32>
    %91 = arith.mulf %89, %90 : vector<10x10xf32>
    %92 = arith.addf %91, %19 : vector<10x10xf32>
    %cst_47 = arith.constant dense<0xFF800000> : vector<10xf32>
    %93 = vector.multi_reduction <maximumf>, %92, %cst_47 [1] : vector<10x10xf32> to vector<10xf32>
    %94 = vector.shape_cast %93 : vector<10xf32> to vector<10x1xf32>
    %95 = vector.broadcast %94 : vector<10x1xf32> to vector<10x10xf32>
    %96 = arith.subf %92, %95 : vector<10x10xf32>
    %97 = math.exp %96 : vector<10x10xf32>
    %cst_48 = arith.constant dense<0.000000e+00> : vector<10xf32>
    %98 = vector.multi_reduction <add>, %97, %cst_48 [1] : vector<10x10xf32> to vector<10xf32>
    %99 = vector.shape_cast %98 : vector<10xf32> to vector<10x1xf32>
    %100 = tpu.reciprocal %99 {approx = true} : vector<10x1xf32> -> vector<10x1xf32>
    %101 = vector.broadcast %100 : vector<10x1xf32> to vector<10x10xf32>
    %102 = arith.mulf %97, %101 : vector<10x10xf32>
    %cst_49 = arith.constant dense<0.000000e+00> : vector<10x8xf32>
    %103 = tpu.matmul %102, %88, %cst_49 {dimension_numbers = #tpu.dot_dimension_numbers<[1], [0], [0], [1], [0, 0, 1, 1], [], []>} : vector<10x10xf32>, vector<10x8xf32>, vector<10x8xf32> -> vector<10x8xf32>
    %104 = vector.extract_strided_slice %49 {offsets = [0, 24], sizes = [10, 8], strides = [1, 1]} : vector<10x96xf32> to vector<10x8xf32>
    %105 = vector.extract_strided_slice %49 {offsets = [0, 56], sizes = [10, 8], strides = [1, 1]} : vector<10x96xf32> to vector<10x8xf32>
    %106 = vector.extract_strided_slice %49 {offsets = [0, 88], sizes = [10, 8], strides = [1, 1]} : vector<10x96xf32> to vector<10x8xf32>
    %cst_50 = arith.constant dense<0.000000e+00> : vector<10x10xf32>
    %107 = tpu.matmul %104, %105, %cst_50 {dimension_numbers = #tpu.dot_dimension_numbers<[1], [1], [0], [0], [0, 0, 1, 0], [], []>} : vector<10x8xf32>, vector<10x8xf32>, vector<10x10xf32> -> vector<10x10xf32>
    %cst_51 = arith.constant 0.353553385 : f32
    %108 = vector.broadcast %cst_51 : f32 to vector<10x10xf32>
    %109 = arith.mulf %107, %108 : vector<10x10xf32>
    %110 = arith.addf %109, %19 : vector<10x10xf32>
    %cst_52 = arith.constant dense<0xFF800000> : vector<10xf32>
    %111 = vector.multi_reduction <maximumf>, %110, %cst_52 [1] : vector<10x10xf32> to vector<10xf32>
    %112 = vector.shape_cast %111 : vector<10xf32> to vector<10x1xf32>
    %113 = vector.broadcast %112 : vector<10x1xf32> to vector<10x10xf32>
    %114 = arith.subf %110, %113 : vector<10x10xf32>
    %115 = math.exp %114 : vector<10x10xf32>
    %cst_53 = arith.constant dense<0.000000e+00> : vector<10xf32>
    %116 = vector.multi_reduction <add>, %115, %cst_53 [1] : vector<10x10xf32> to vector<10xf32>
    %117 = vector.shape_cast %116 : vector<10xf32> to vector<10x1xf32>
    %118 = tpu.reciprocal %117 {approx = true} : vector<10x1xf32> -> vector<10x1xf32>
    %119 = vector.broadcast %118 : vector<10x1xf32> to vector<10x10xf32>
    %120 = arith.mulf %115, %119 : vector<10x10xf32>
    %cst_54 = arith.constant dense<0.000000e+00> : vector<10x8xf32>
    %121 = tpu.matmul %120, %106, %cst_54 {dimension_numbers = #tpu.dot_dimension_numbers<[1], [0], [0], [1], [0, 0, 1, 1], [], []>} : vector<10x10xf32>, vector<10x8xf32>, vector<10x8xf32> -> vector<10x8xf32>
    %122 = tpu.concatenate %67, %85, %103, %121 in 1 : vector<10x8xf32>, vector<10x8xf32>, vector<10x8xf32>, vector<10x8xf32> -> vector<10x32xf32>
    %c0_55 = arith.constant 0 : index
    %c0_56 = arith.constant 0 : index
    %c0_57 = arith.constant 0 : index
    %123 = vector.load %arg10[%c0_55, %c0_56, %c0_57] : memref<2x32x32xf32, #tpu.memory_space<vmem>>, vector<1x32x32xf32>
    %124 = vector.shape_cast %123 : vector<1x32x32xf32> to vector<32x32xf32>
    %cst_58 = arith.constant dense<0.000000e+00> : vector<10x32xf32>
    %125 = tpu.matmul %122, %124, %cst_58 {dimension_numbers = #tpu.dot_dimension_numbers<[1], [0], [0], [1], [0, 0, 1, 1], [], []>} : vector<10x32xf32>, vector<32x32xf32>, vector<10x32xf32> -> vector<10x32xf32>
    %c0_59 = arith.constant 0 : index
    %c0_60 = arith.constant 0 : index
    %126 = vector.load %arg11[%c0_59, %c0_60] : memref<2x32xf32, #tpu.memory_space<vmem>>, vector<1x32xf32>
    %127 = vector.broadcast %126 : vector<1x32xf32> to vector<10x32xf32>
    %128 = arith.addf %125, %127 : vector<10x32xf32>
    %129 = arith.addf %18, %128 : vector<10x32xf32>
    %c0_61 = arith.constant 0 : index
    %c0_62 = arith.constant 0 : index
    %130 = vector.load %arg12[%c0_61, %c0_62] : memref<2x32xf32, #tpu.memory_space<vmem>>, vector<1x32xf32>
    %c0_63 = arith.constant 0 : index
    %c0_64 = arith.constant 0 : index
    %131 = vector.load %arg13[%c0_63, %c0_64] : memref<2x32xf32, #tpu.memory_space<vmem>>, vector<1x32xf32>
    %cst_65 = arith.constant dense<0.000000e+00> : vector<10xf32>
    %132 = vector.multi_reduction <add>, %129, %cst_65 [1] : vector<10x32xf32> to vector<10xf32>
    %133 = vector.shape_cast %132 : vector<10xf32> to vector<10x1xf32>
    %cst_66 = arith.constant 3.200000e+01 : f32
    %134 = vector.broadcast %cst_66 : f32 to vector<10x1xf32>
    %135 = arith.divf %133, %134 : vector<10x1xf32>
    %136 = vector.broadcast %135 : vector<10x1xf32> to vector<10x32xf32>
    %137 = arith.subf %129, %136 : vector<10x32xf32>
    %138 = arith.mulf %137, %137 : vector<10x32xf32>
    %cst_67 = arith.constant dense<0.000000e+00> : vector<10xf32>
    %139 = vector.multi_reduction <add>, %138, %cst_67 [1] : vector<10x32xf32> to vector<10xf32>
    %140 = vector.shape_cast %139 : vector<10xf32> to vector<10x1xf32>
    %cst_68 = arith.constant 3.200000e+01 : f32
    %141 = vector.broadcast %cst_68 : f32 to vector<10x1xf32>
    %142 = arith.divf %140, %141 : vector<10x1xf32>
    %143 = vector.broadcast %135 : vector<10x1xf32> to vector<10x32xf32>
    %144 = arith.subf %129, %143 : vector<10x32xf32>
    %cst_69 = arith.constant 9.99999997E-7 : f32
    %145 = vector.broadcast %cst_69 : f32 to vector<10x1xf32>
    %146 = arith.addf %142, %145 : vector<10x1xf32>
    %147 = math.rsqrt %146 : vector<10x1xf32>
    %148 = vector.broadcast %147 : vector<10x1xf32> to vector<10x32xf32>
    %149 = arith.mulf %144, %148 : vector<10x32xf32>
    %150 = vector.broadcast %130 : vector<1x32xf32> to vector<10x32xf32>
    %151 = arith.mulf %149, %150 : vector<10x32xf32>
    %152 = vector.broadcast %131 : vector<1x32xf32> to vector<10x32xf32>
    %153 = arith.addf %151, %152 : vector<10x32xf32>
    %c0_70 = arith.constant 0 : index
    %c0_71 = arith.constant 0 : index
    %c0_72 = arith.constant 0 : index
    %154 = vector.load %arg14[%c0_70, %c0_71, %c0_72] : memref<2x32x64xf32, #tpu.memory_space<vmem>>, vector<1x32x64xf32>
    %155 = vector.shape_cast %154 : vector<1x32x64xf32> to vector<32x64xf32>
    %cst_73 = arith.constant dense<0.000000e+00> : vector<10x64xf32>
    %156 = tpu.matmul %153, %155, %cst_73 {dimension_numbers = #tpu.dot_dimension_numbers<[1], [0], [0], [1], [0, 0, 1, 1], [], []>} : vector<10x32xf32>, vector<32x64xf32>, vector<10x64xf32> -> vector<10x64xf32>
    %c0_74 = arith.constant 0 : index
    %c0_75 = arith.constant 0 : index
    %157 = vector.load %arg15[%c0_74, %c0_75] : memref<2x64xf32, #tpu.memory_space<vmem>>, vector<1x64xf32>
    %158 = vector.broadcast %157 : vector<1x64xf32> to vector<10x64xf32>
    %159 = arith.addf %156, %158 : vector<10x64xf32>
    %cst_76 = arith.constant 5.000000e-01 : f32
    %160 = vector.broadcast %cst_76 : f32 to vector<10x64xf32>
    %161 = arith.mulf %160, %159 : vector<10x64xf32>
    %cst_77 = arith.constant 0.707106769 : f32
    %162 = vector.broadcast %cst_77 : f32 to vector<10x64xf32>
    %163 = arith.mulf %159, %162 : vector<10x64xf32>
    %164 = math.erf %163 : vector<10x64xf32>
    %cst_78 = arith.constant 1.000000e+00 : f32
    %165 = vector.broadcast %cst_78 : f32 to vector<10x64xf32>
    %166 = arith.addf %165, %164 : vector<10x64xf32>
    %167 = arith.mulf %161, %166 : vector<10x64xf32>
    %c0_79 = arith.constant 0 : index
    %c0_80 = arith.constant 0 : index
    %c0_81 = arith.constant 0 : index
    %168 = vector.load %arg16[%c0_79, %c0_80, %c0_81] : memref<2x64x32xf32, #tpu.memory_space<vmem>>, vector<1x64x32xf32>
    %169 = vector.shape_cast %168 : vector<1x64x32xf32> to vector<64x32xf32>
    %cst_82 = arith.constant dense<0.000000e+00> : vector<10x32xf32>
    %170 = tpu.matmul %167, %169, %cst_82 {dimension_numbers = #tpu.dot_dimension_numbers<[1], [0], [0], [1], [0, 0, 1, 1], [], []>} : vector<10x64xf32>, vector<64x32xf32>, vector<10x32xf32> -> vector<10x32xf32>
    %c0_83 = arith.constant 0 : index
    %c0_84 = arith.constant 0 : index
    %171 = vector.load %arg17[%c0_83, %c0_84] : memref<2x32xf32, #tpu.memory_space<vmem>>, vector<1x32xf32>
    %172 = vector.broadcast %171 : vector<1x32xf32> to vector<10x32xf32>
    %173 = arith.addf %170, %172 : vector<10x32xf32>
    %174 = arith.addf %129, %173 : vector<10x32xf32>
    %c1_85 = arith.constant 1 : index
    %c0_86 = arith.constant 0 : index
    %175 = vector.load %arg6[%c1_85, %c0_86] : memref<2x32xf32, #tpu.memory_space<vmem>>, vector<1x32xf32>
    %c1_87 = arith.constant 1 : index
    %c0_88 = arith.constant 0 : index
    %176 = vector.load %arg7[%c1_87, %c0_88] : memref<2x32xf32, #tpu.memory_space<vmem>>, vector<1x32xf32>
    %cst_89 = arith.constant dense<0.000000e+00> : vector<10xf32>
    %177 = vector.multi_reduction <add>, %174, %cst_89 [1] : vector<10x32xf32> to vector<10xf32>
    %178 = vector.shape_cast %177 : vector<10xf32> to vector<10x1xf32>
    %cst_90 = arith.constant 3.200000e+01 : f32
    %179 = vector.broadcast %cst_90 : f32 to vector<10x1xf32>
    %180 = arith.divf %178, %179 : vector<10x1xf32>
    %181 = vector.broadcast %180 : vector<10x1xf32> to vector<10x32xf32>
    %182 = arith.subf %174, %181 : vector<10x32xf32>
    %183 = arith.mulf %182, %182 : vector<10x32xf32>
    %cst_91 = arith.constant dense<0.000000e+00> : vector<10xf32>
    %184 = vector.multi_reduction <add>, %183, %cst_91 [1] : vector<10x32xf32> to vector<10xf32>
    %185 = vector.shape_cast %184 : vector<10xf32> to vector<10x1xf32>
    %cst_92 = arith.constant 3.200000e+01 : f32
    %186 = vector.broadcast %cst_92 : f32 to vector<10x1xf32>
    %187 = arith.divf %185, %186 : vector<10x1xf32>
    %188 = vector.broadcast %180 : vector<10x1xf32> to vector<10x32xf32>
    %189 = arith.subf %174, %188 : vector<10x32xf32>
    %cst_93 = arith.constant 9.99999997E-7 : f32
    %190 = vector.broadcast %cst_93 : f32 to vector<10x1xf32>
    %191 = arith.addf %187, %190 : vector<10x1xf32>
    %192 = math.rsqrt %191 : vector<10x1xf32>
    %193 = vector.broadcast %192 : vector<10x1xf32> to vector<10x32xf32>
    %194 = arith.mulf %189, %193 : vector<10x32xf32>
    %195 = vector.broadcast %175 : vector<1x32xf32> to vector<10x32xf32>
    %196 = arith.mulf %194, %195 : vector<10x32xf32>
    %197 = vector.broadcast %176 : vector<1x32xf32> to vector<10x32xf32>
    %198 = arith.addf %196, %197 : vector<10x32xf32>
    %c1_94 = arith.constant 1 : index
    %c0_95 = arith.constant 0 : index
    %c0_96 = arith.constant 0 : index
    %199 = vector.load %arg8[%c1_94, %c0_95, %c0_96] : memref<2x32x96xf32, #tpu.memory_space<vmem>>, vector<1x32x96xf32>
    %200 = vector.shape_cast %199 : vector<1x32x96xf32> to vector<32x96xf32>
    %cst_97 = arith.constant dense<0.000000e+00> : vector<10x96xf32>
    %201 = tpu.matmul %198, %200, %cst_97 {dimension_numbers = #tpu.dot_dimension_numbers<[1], [0], [0], [1], [0, 0, 1, 1], [], []>} : vector<10x32xf32>, vector<32x96xf32>, vector<10x96xf32> -> vector<10x96xf32>
    %c1_98 = arith.constant 1 : index
    %c0_99 = arith.constant 0 : index
    %202 = vector.load %arg9[%c1_98, %c0_99] : memref<2x96xf32, #tpu.memory_space<vmem>>, vector<1x96xf32>
    %203 = vector.broadcast %202 : vector<1x96xf32> to vector<10x96xf32>
    %204 = arith.addf %201, %203 : vector<10x96xf32>
    %205 = vector.extract_strided_slice %204 {offsets = [0, 0], sizes = [10, 8], strides = [1, 1]} : vector<10x96xf32> to vector<10x8xf32>
    %206 = vector.extract_strided_slice %204 {offsets = [0, 32], sizes = [10, 8], strides = [1, 1]} : vector<10x96xf32> to vector<10x8xf32>
    %207 = vector.extract_strided_slice %204 {offsets = [0, 64], sizes = [10, 8], strides = [1, 1]} : vector<10x96xf32> to vector<10x8xf32>
    %cst_100 = arith.constant dense<0.000000e+00> : vector<10x10xf32>
    %208 = tpu.matmul %205, %206, %cst_100 {dimension_numbers = #tpu.dot_dimension_numbers<[1], [1], [0], [0], [0, 0, 1, 0], [], []>} : vector<10x8xf32>, vector<10x8xf32>, vector<10x10xf32> -> vector<10x10xf32>
    %cst_101 = arith.constant 0.353553385 : f32
    %209 = vector.broadcast %cst_101 : f32 to vector<10x10xf32>
    %210 = arith.mulf %208, %209 : vector<10x10xf32>
    %211 = arith.addf %210, %19 : vector<10x10xf32>
    %cst_102 = arith.constant dense<0xFF800000> : vector<10xf32>
    %212 = vector.multi_reduction <maximumf>, %211, %cst_102 [1] : vector<10x10xf32> to vector<10xf32>
    %213 = vector.shape_cast %212 : vector<10xf32> to vector<10x1xf32>
    %214 = vector.broadcast %213 : vector<10x1xf32> to vector<10x10xf32>
    %215 = arith.subf %211, %214 : vector<10x10xf32>
    %216 = math.exp %215 : vector<10x10xf32>
    %cst_103 = arith.constant dense<0.000000e+00> : vector<10xf32>
    %217 = vector.multi_reduction <add>, %216, %cst_103 [1] : vector<10x10xf32> to vector<10xf32>
    %218 = vector.shape_cast %217 : vector<10xf32> to vector<10x1xf32>
    %219 = tpu.reciprocal %218 {approx = true} : vector<10x1xf32> -> vector<10x1xf32>
    %220 = vector.broadcast %219 : vector<10x1xf32> to vector<10x10xf32>
    %221 = arith.mulf %216, %220 : vector<10x10xf32>
    %cst_104 = arith.constant dense<0.000000e+00> : vector<10x8xf32>
    %222 = tpu.matmul %221, %207, %cst_104 {dimension_numbers = #tpu.dot_dimension_numbers<[1], [0], [0], [1], [0, 0, 1, 1], [], []>} : vector<10x10xf32>, vector<10x8xf32>, vector<10x8xf32> -> vector<10x8xf32>
    %223 = vector.extract_strided_slice %204 {offsets = [0, 8], sizes = [10, 8], strides = [1, 1]} : vector<10x96xf32> to vector<10x8xf32>
    %224 = vector.extract_strided_slice %204 {offsets = [0, 40], sizes = [10, 8], strides = [1, 1]} : vector<10x96xf32> to vector<10x8xf32>
    %225 = vector.extract_strided_slice %204 {offsets = [0, 72], sizes = [10, 8], strides = [1, 1]} : vector<10x96xf32> to vector<10x8xf32>
    %cst_105 = arith.constant dense<0.000000e+00> : vector<10x10xf32>
    %226 = tpu.matmul %223, %224, %cst_105 {dimension_numbers = #tpu.dot_dimension_numbers<[1], [1], [0], [0], [0, 0, 1, 0], [], []>} : vector<10x8xf32>, vector<10x8xf32>, vector<10x10xf32> -> vector<10x10xf32>
    %cst_106 = arith.constant 0.353553385 : f32
    %227 = vector.broadcast %cst_106 : f32 to vector<10x10xf32>
    %228 = arith.mulf %226, %227 : vector<10x10xf32>
    %229 = arith.addf %228, %19 : vector<10x10xf32>
    %cst_107 = arith.constant dense<0xFF800000> : vector<10xf32>
    %230 = vector.multi_reduction <maximumf>, %229, %cst_107 [1] : vector<10x10xf32> to vector<10xf32>
    %231 = vector.shape_cast %230 : vector<10xf32> to vector<10x1xf32>
    %232 = vector.broadcast %231 : vector<10x1xf32> to vector<10x10xf32>
    %233 = arith.subf %229, %232 : vector<10x10xf32>
    %234 = math.exp %233 : vector<10x10xf32>
    %cst_108 = arith.constant dense<0.000000e+00> : vector<10xf32>
    %235 = vector.multi_reduction <add>, %234, %cst_108 [1] : vector<10x10xf32> to vector<10xf32>
    %236 = vector.shape_cast %235 : vector<10xf32> to vector<10x1xf32>
    %237 = tpu.reciprocal %236 {approx = true} : vector<10x1xf32> -> vector<10x1xf32>
    %238 = vector.broadcast %237 : vector<10x1xf32> to vector<10x10xf32>
    %239 = arith.mulf %234, %238 : vector<10x10xf32>
    %cst_109 = arith.constant dense<0.000000e+00> : vector<10x8xf32>
    %240 = tpu.matmul %239, %225, %cst_109 {dimension_numbers = #tpu.dot_dimension_numbers<[1], [0], [0], [1], [0, 0, 1, 1], [], []>} : vector<10x10xf32>, vector<10x8xf32>, vector<10x8xf32> -> vector<10x8xf32>
    %241 = vector.extract_strided_slice %204 {offsets = [0, 16], sizes = [10, 8], strides = [1, 1]} : vector<10x96xf32> to vector<10x8xf32>
    %242 = vector.extract_strided_slice %204 {offsets = [0, 48], sizes = [10, 8], strides = [1, 1]} : vector<10x96xf32> to vector<10x8xf32>
    %243 = vector.extract_strided_slice %204 {offsets = [0, 80], sizes = [10, 8], strides = [1, 1]} : vector<10x96xf32> to vector<10x8xf32>
    %cst_110 = arith.constant dense<0.000000e+00> : vector<10x10xf32>
    %244 = tpu.matmul %241, %242, %cst_110 {dimension_numbers = #tpu.dot_dimension_numbers<[1], [1], [0], [0], [0, 0, 1, 0], [], []>} : vector<10x8xf32>, vector<10x8xf32>, vector<10x10xf32> -> vector<10x10xf32>
    %cst_111 = arith.constant 0.353553385 : f32
    %245 = vector.broadcast %cst_111 : f32 to vector<10x10xf32>
    %246 = arith.mulf %244, %245 : vector<10x10xf32>
    %247 = arith.addf %246, %19 : vector<10x10xf32>
    %cst_112 = arith.constant dense<0xFF800000> : vector<10xf32>
    %248 = vector.multi_reduction <maximumf>, %247, %cst_112 [1] : vector<10x10xf32> to vector<10xf32>
    %249 = vector.shape_cast %248 : vector<10xf32> to vector<10x1xf32>
    %250 = vector.broadcast %249 : vector<10x1xf32> to vector<10x10xf32>
    %251 = arith.subf %247, %250 : vector<10x10xf32>
    %252 = math.exp %251 : vector<10x10xf32>
    %cst_113 = arith.constant dense<0.000000e+00> : vector<10xf32>
    %253 = vector.multi_reduction <add>, %252, %cst_113 [1] : vector<10x10xf32> to vector<10xf32>
    %254 = vector.shape_cast %253 : vector<10xf32> to vector<10x1xf32>
    %255 = tpu.reciprocal %254 {approx = true} : vector<10x1xf32> -> vector<10x1xf32>
    %256 = vector.broadcast %255 : vector<10x1xf32> to vector<10x10xf32>
    %257 = arith.mulf %252, %256 : vector<10x10xf32>
    %cst_114 = arith.constant dense<0.000000e+00> : vector<10x8xf32>
    %258 = tpu.matmul %257, %243, %cst_114 {dimension_numbers = #tpu.dot_dimension_numbers<[1], [0], [0], [1], [0, 0, 1, 1], [], []>} : vector<10x10xf32>, vector<10x8xf32>, vector<10x8xf32> -> vector<10x8xf32>
    %259 = vector.extract_strided_slice %204 {offsets = [0, 24], sizes = [10, 8], strides = [1, 1]} : vector<10x96xf32> to vector<10x8xf32>
    %260 = vector.extract_strided_slice %204 {offsets = [0, 56], sizes = [10, 8], strides = [1, 1]} : vector<10x96xf32> to vector<10x8xf32>
    %261 = vector.extract_strided_slice %204 {offsets = [0, 88], sizes = [10, 8], strides = [1, 1]} : vector<10x96xf32> to vector<10x8xf32>
    %cst_115 = arith.constant dense<0.000000e+00> : vector<10x10xf32>
    %262 = tpu.matmul %259, %260, %cst_115 {dimension_numbers = #tpu.dot_dimension_numbers<[1], [1], [0], [0], [0, 0, 1, 0], [], []>} : vector<10x8xf32>, vector<10x8xf32>, vector<10x10xf32> -> vector<10x10xf32>
    %cst_116 = arith.constant 0.353553385 : f32
    %263 = vector.broadcast %cst_116 : f32 to vector<10x10xf32>
    %264 = arith.mulf %262, %263 : vector<10x10xf32>
    %265 = arith.addf %264, %19 : vector<10x10xf32>
    %cst_117 = arith.constant dense<0xFF800000> : vector<10xf32>
    %266 = vector.multi_reduction <maximumf>, %265, %cst_117 [1] : vector<10x10xf32> to vector<10xf32>
    %267 = vector.shape_cast %266 : vector<10xf32> to vector<10x1xf32>
    %268 = vector.broadcast %267 : vector<10x1xf32> to vector<10x10xf32>
    %269 = arith.subf %265, %268 : vector<10x10xf32>
    %270 = math.exp %269 : vector<10x10xf32>
    %cst_118 = arith.constant dense<0.000000e+00> : vector<10xf32>
    %271 = vector.multi_reduction <add>, %270, %cst_118 [1] : vector<10x10xf32> to vector<10xf32>
    %272 = vector.shape_cast %271 : vector<10xf32> to vector<10x1xf32>
    %273 = tpu.reciprocal %272 {approx = true} : vector<10x1xf32> -> vector<10x1xf32>
    %274 = vector.broadcast %273 : vector<10x1xf32> to vector<10x10xf32>
    %275 = arith.mulf %270, %274 : vector<10x10xf32>
    %cst_119 = arith.constant dense<0.000000e+00> : vector<10x8xf32>
    %276 = tpu.matmul %275, %261, %cst_119 {dimension_numbers = #tpu.dot_dimension_numbers<[1], [0], [0], [1], [0, 0, 1, 1], [], []>} : vector<10x10xf32>, vector<10x8xf32>, vector<10x8xf32> -> vector<10x8xf32>
    %277 = tpu.concatenate %222, %240, %258, %276 in 1 : vector<10x8xf32>, vector<10x8xf32>, vector<10x8xf32>, vector<10x8xf32> -> vector<10x32xf32>
    %c1_120 = arith.constant 1 : index
    %c0_121 = arith.constant 0 : index
    %c0_122 = arith.constant 0 : index
    %278 = vector.load %arg10[%c1_120, %c0_121, %c0_122] : memref<2x32x32xf32, #tpu.memory_space<vmem>>, vector<1x32x32xf32>
    %279 = vector.shape_cast %278 : vector<1x32x32xf32> to vector<32x32xf32>
    %cst_123 = arith.constant dense<0.000000e+00> : vector<10x32xf32>
    %280 = tpu.matmul %277, %279, %cst_123 {dimension_numbers = #tpu.dot_dimension_numbers<[1], [0], [0], [1], [0, 0, 1, 1], [], []>} : vector<10x32xf32>, vector<32x32xf32>, vector<10x32xf32> -> vector<10x32xf32>
    %c1_124 = arith.constant 1 : index
    %c0_125 = arith.constant 0 : index
    %281 = vector.load %arg11[%c1_124, %c0_125] : memref<2x32xf32, #tpu.memory_space<vmem>>, vector<1x32xf32>
    %282 = vector.broadcast %281 : vector<1x32xf32> to vector<10x32xf32>
    %283 = arith.addf %280, %282 : vector<10x32xf32>
    %284 = arith.addf %174, %283 : vector<10x32xf32>
    %c1_126 = arith.constant 1 : index
    %c0_127 = arith.constant 0 : index
    %285 = vector.load %arg12[%c1_126, %c0_127] : memref<2x32xf32, #tpu.memory_space<vmem>>, vector<1x32xf32>
    %c1_128 = arith.constant 1 : index
    %c0_129 = arith.constant 0 : index
    %286 = vector.load %arg13[%c1_128, %c0_129] : memref<2x32xf32, #tpu.memory_space<vmem>>, vector<1x32xf32>
    %cst_130 = arith.constant dense<0.000000e+00> : vector<10xf32>
    %287 = vector.multi_reduction <add>, %284, %cst_130 [1] : vector<10x32xf32> to vector<10xf32>
    %288 = vector.shape_cast %287 : vector<10xf32> to vector<10x1xf32>
    %cst_131 = arith.constant 3.200000e+01 : f32
    %289 = vector.broadcast %cst_131 : f32 to vector<10x1xf32>
    %290 = arith.divf %288, %289 : vector<10x1xf32>
    %291 = vector.broadcast %290 : vector<10x1xf32> to vector<10x32xf32>
    %292 = arith.subf %284, %291 : vector<10x32xf32>
    %293 = arith.mulf %292, %292 : vector<10x32xf32>
    %cst_132 = arith.constant dense<0.000000e+00> : vector<10xf32>
    %294 = vector.multi_reduction <add>, %293, %cst_132 [1] : vector<10x32xf32> to vector<10xf32>
    %295 = vector.shape_cast %294 : vector<10xf32> to vector<10x1xf32>
    %cst_133 = arith.constant 3.200000e+01 : f32
    %296 = vector.broadcast %cst_133 : f32 to vector<10x1xf32>
    %297 = arith.divf %295, %296 : vector<10x1xf32>
    %298 = vector.broadcast %290 : vector<10x1xf32> to vector<10x32xf32>
    %299 = arith.subf %284, %298 : vector<10x32xf32>
    %cst_134 = arith.constant 9.99999997E-7 : f32
    %300 = vector.broadcast %cst_134 : f32 to vector<10x1xf32>
    %301 = arith.addf %297, %300 : vector<10x1xf32>
    %302 = math.rsqrt %301 : vector<10x1xf32>
    %303 = vector.broadcast %302 : vector<10x1xf32> to vector<10x32xf32>
    %304 = arith.mulf %299, %303 : vector<10x32xf32>
    %305 = vector.broadcast %285 : vector<1x32xf32> to vector<10x32xf32>
    %306 = arith.mulf %304, %305 : vector<10x32xf32>
    %307 = vector.broadcast %286 : vector<1x32xf32> to vector<10x32xf32>
    %308 = arith.addf %306, %307 : vector<10x32xf32>
    %c1_135 = arith.constant 1 : index
    %c0_136 = arith.constant 0 : index
    %c0_137 = arith.constant 0 : index
    %309 = vector.load %arg14[%c1_135, %c0_136, %c0_137] : memref<2x32x64xf32, #tpu.memory_space<vmem>>, vector<1x32x64xf32>
    %310 = vector.shape_cast %309 : vector<1x32x64xf32> to vector<32x64xf32>
    %cst_138 = arith.constant dense<0.000000e+00> : vector<10x64xf32>
    %311 = tpu.matmul %308, %310, %cst_138 {dimension_numbers = #tpu.dot_dimension_numbers<[1], [0], [0], [1], [0, 0, 1, 1], [], []>} : vector<10x32xf32>, vector<32x64xf32>, vector<10x64xf32> -> vector<10x64xf32>
    %c1_139 = arith.constant 1 : index
    %c0_140 = arith.constant 0 : index
    %312 = vector.load %arg15[%c1_139, %c0_140] : memref<2x64xf32, #tpu.memory_space<vmem>>, vector<1x64xf32>
    %313 = vector.broadcast %312 : vector<1x64xf32> to vector<10x64xf32>
    %314 = arith.addf %311, %313 : vector<10x64xf32>
    %cst_141 = arith.constant 5.000000e-01 : f32
    %315 = vector.broadcast %cst_141 : f32 to vector<10x64xf32>
    %316 = arith.mulf %315, %314 : vector<10x64xf32>
    %cst_142 = arith.constant 0.707106769 : f32
    %317 = vector.broadcast %cst_142 : f32 to vector<10x64xf32>
    %318 = arith.mulf %314, %317 : vector<10x64xf32>
    %319 = math.erf %318 : vector<10x64xf32>
    %cst_143 = arith.constant 1.000000e+00 : f32
    %320 = vector.broadcast %cst_143 : f32 to vector<10x64xf32>
    %321 = arith.addf %320, %319 : vector<10x64xf32>
    %322 = arith.mulf %316, %321 : vector<10x64xf32>
    %c1_144 = arith.constant 1 : index
    %c0_145 = arith.constant 0 : index
    %c0_146 = arith.constant 0 : index
    %323 = vector.load %arg16[%c1_144, %c0_145, %c0_146] : memref<2x64x32xf32, #tpu.memory_space<vmem>>, vector<1x64x32xf32>
    %324 = vector.shape_cast %323 : vector<1x64x32xf32> to vector<64x32xf32>
    %cst_147 = arith.constant dense<0.000000e+00> : vector<10x32xf32>
    %325 = tpu.matmul %322, %324, %cst_147 {dimension_numbers = #tpu.dot_dimension_numbers<[1], [0], [0], [1], [0, 0, 1, 1], [], []>} : vector<10x64xf32>, vector<64x32xf32>, vector<10x32xf32> -> vector<10x32xf32>
    %c1_148 = arith.constant 1 : index
    %c0_149 = arith.constant 0 : index
    %326 = vector.load %arg17[%c1_148, %c0_149] : memref<2x32xf32, #tpu.memory_space<vmem>>, vector<1x32xf32>
    %327 = vector.broadcast %326 : vector<1x32xf32> to vector<10x32xf32>
    %328 = arith.addf %325, %327 : vector<10x32xf32>
    %329 = arith.addf %284, %328 : vector<10x32xf32>
    %c0_150 = arith.constant 0 : index
    %c0_151 = arith.constant 0 : index
    %330 = vector.load %arg18[%c0_150, %c0_151] : memref<1x32xf32, #tpu.memory_space<vmem>>, vector<1x32xf32>
    %c0_152 = arith.constant 0 : index
    %c0_153 = arith.constant 0 : index
    %331 = vector.load %arg19[%c0_152, %c0_153] : memref<1x32xf32, #tpu.memory_space<vmem>>, vector<1x32xf32>
    %cst_154 = arith.constant dense<0.000000e+00> : vector<10xf32>
    %332 = vector.multi_reduction <add>, %329, %cst_154 [1] : vector<10x32xf32> to vector<10xf32>
    %333 = vector.shape_cast %332 : vector<10xf32> to vector<10x1xf32>
    %cst_155 = arith.constant 3.200000e+01 : f32
    %334 = vector.broadcast %cst_155 : f32 to vector<10x1xf32>
    %335 = arith.divf %333, %334 : vector<10x1xf32>
    %336 = vector.broadcast %335 : vector<10x1xf32> to vector<10x32xf32>
    %337 = arith.subf %329, %336 : vector<10x32xf32>
    %338 = arith.mulf %337, %337 : vector<10x32xf32>
    %cst_156 = arith.constant dense<0.000000e+00> : vector<10xf32>
    %339 = vector.multi_reduction <add>, %338, %cst_156 [1] : vector<10x32xf32> to vector<10xf32>
    %340 = vector.shape_cast %339 : vector<10xf32> to vector<10x1xf32>
    %cst_157 = arith.constant 3.200000e+01 : f32
    %341 = vector.broadcast %cst_157 : f32 to vector<10x1xf32>
    %342 = arith.divf %340, %341 : vector<10x1xf32>
    %343 = vector.broadcast %335 : vector<10x1xf32> to vector<10x32xf32>
    %344 = arith.subf %329, %343 : vector<10x32xf32>
    %cst_158 = arith.constant 9.99999997E-7 : f32
    %345 = vector.broadcast %cst_158 : f32 to vector<10x1xf32>
    %346 = arith.addf %342, %345 : vector<10x1xf32>
    %347 = math.rsqrt %346 : vector<10x1xf32>
    %348 = vector.broadcast %347 : vector<10x1xf32> to vector<10x32xf32>
    %349 = arith.mulf %344, %348 : vector<10x32xf32>
    %350 = vector.broadcast %330 : vector<1x32xf32> to vector<10x32xf32>
    %351 = arith.mulf %349, %350 : vector<10x32xf32>
    %352 = vector.broadcast %331 : vector<1x32xf32> to vector<10x32xf32>
    %353 = arith.addf %351, %352 : vector<10x32xf32>
    %c0_159 = arith.constant 0 : index
    %c0_160 = arith.constant 0 : index
    %354 = vector.load %arg20[%c0_159, %c0_160] : memref<1x32xf32, #tpu.memory_space<vmem>>, vector<1x32xf32>
    %c0_161 = arith.constant 0 : index
    %c0_162 = arith.constant 0 : index
    %355 = vector.load %arg21[%c0_161, %c0_162] : memref<1x1xf32, #tpu.memory_space<vmem>>, vector<1x1xf32>
    %356 = vector.extract_strided_slice %353 {offsets = [0, 0], sizes = [1, 32], strides = [1, 1]} : vector<10x32xf32> to vector<1x32xf32>
    %357 = arith.mulf %356, %354 : vector<1x32xf32>
    %cst_163 = arith.constant dense<0.000000e+00> : vector<1xf32>
    %358 = vector.multi_reduction <add>, %357, %cst_163 [1] : vector<1x32xf32> to vector<1xf32>
    %359 = vector.shape_cast %358 : vector<1xf32> to vector<1x1xf32>
    %360 = arith.addf %359, %355 : vector<1x1xf32>
    %c0_164 = arith.constant 0 : index
    %c0_165 = arith.constant 0 : index
    %361 = vector.load %arg22[%c0_164, %c0_165] : memref<2x1xf32, #tpu.memory_space<vmem>>, vector<1x1xf32>
    tpu.vector_store %arg22[%c0_164, %c0_165], %360 {strides = array<i32>} : memref<2x1xf32, #tpu.memory_space<vmem>>, vector<1x1xf32>,
    %362 = vector.extract_strided_slice %353 {offsets = [5, 0], sizes = [1, 32], strides = [1, 1]} : vector<10x32xf32> to vector<1x32xf32>
    %363 = arith.mulf %362, %354 : vector<1x32xf32>
    %cst_166 = arith.constant dense<0.000000e+00> : vector<1xf32>
    %364 = vector.multi_reduction <add>, %363, %cst_166 [1] : vector<1x32xf32> to vector<1xf32>
    %365 = vector.shape_cast %364 : vector<1xf32> to vector<1x1xf32>
    %366 = arith.addf %365, %355 : vector<1x1xf32>
    %c1_167 = arith.constant 1 : index
    %c0_168 = arith.constant 0 : index
    %367 = vector.load %arg22[%c1_167, %c0_168] : memref<2x1xf32, #tpu.memory_space<vmem>>, vector<1x1xf32>
    tpu.vector_store %arg22[%c1_167, %c0_168], %366 {strides = array<i32>} : memref<2x1xf32, #tpu.memory_space<vmem>>, vector<1x1xf32>,
    return
  }
}

</mosaic_0001>

<llo_original>
// kernel: vit_regressor_forward.1
$region0: #{vit_regressor_forward.1}
  #allocation0 [shape = 'u32[]', space=smem, size = 0x4, offset = 0x4, fixed_abs, tag = 'smem constant byte address 0x4 - core index']
  #allocation1 [shape = 'u32[72,128]{1,0:T(1,128)}', space=vmem, size = 0x9000, scoped, tag = 'internal scratch']
  #allocation2 [shape = 'f32[10,32]{1,0:T(8,128)}', space=vmem, size = 0x2000, scoped, tag = 'scratch operand']
  #allocation3 [shape = 'f32[1,1]{1,0:T(1,128)S(1)}', space=vmem, size = 0x200, scoped, tag = 'scoped memory for vit_regressor_forward.1']
  %s0 = inlined_call_operand.vmem [shape: f32[8,768], index: 0, kind: input, shape index: {}]
  %s1 = inlined_call_operand.vmem [shape: f32[768,32], index: 1, kind: input, shape index: {}]
  %s2 = inlined_call_operand.vmem [shape: f32[1,32], index: 2, kind: input, shape index: {}]
  %s3 = inlined_call_operand.vmem [shape: f32[1,32], index: 3, kind: input, shape index: {}]
  %s4 = inlined_call_operand.vmem [shape: f32[5,32], index: 4, kind: input, shape index: {}]
  %s5 = inlined_call_operand.vmem [shape: f32[10,10], index: 5, kind: input, shape index: {}]
  %s6 = inlined_call_operand.vmem [shape: f32[2,32], index: 6, kind: input, shape index: {}]
  %s7 = inlined_call_operand.vmem [shape: f32[2,32], index: 7, kind: input, shape index: {}]
  %s8 = inlined_call_operand.vmem [shape: f32[2,32,96], index: 8, kind: input, shape index: {}]
  %s9 = inlined_call_operand.vmem [shape: f32[2,96], index: 9, kind: input, shape index: {}]
  %s10 = inlined_call_operand.vmem [shape: f32[2,32,32], index: 10, kind: input, shape index: {}]
  %s11 = inlined_call_operand.vmem [shape: f32[2,32], index: 11, kind: input, shape index: {}]
  %s12 = inlined_call_operand.vmem [shape: f32[2,32], index: 12, kind: input, shape index: {}]
  %s13 = inlined_call_operand.vmem [shape: f32[2,32], index: 13, kind: input, shape index: {}]
  %s14 = inlined_call_operand.vmem [shape: f32[2,32,64], index: 14, kind: input, shape index: {}]
  %s15 = inlined_call_operand.vmem [shape: f32[2,64], index: 15, kind: input, shape index: {}]
  %s16 = inlined_call_operand.vmem [shape: f32[2,64,32], index: 16, kind: input, shape index: {}]
  %s17 = inlined_call_operand.vmem [shape: f32[2,32], index: 17, kind: input, shape index: {}]
  %s18 = inlined_call_operand.vmem [shape: f32[1,32], index: 18, kind: input, shape index: {}]
  %s19 = inlined_call_operand.vmem [shape: f32[1,32], index: 19, kind: input, shape index: {}]
  %s20 = inlined_call_operand.vmem [shape: f32[1,32], index: 20, kind: input, shape index: {}]
  %s21 = inlined_call_operand.<no memory space> [shape: f32[1,1], index: 21, kind: input, shape index: {}]
  %s22 = inlined_call_operand.vmem [shape: f32[2,1], index: 22, kind: output, shape index: {}]
  %s23 = sld [smem:[#allocation0]]
  $region98: #{vit_regressor_forward.1} parent=0
    _
  %s25 = ssub.s32 1, %s23
  %s26 = scalar_select 0, %s25, %s23
  %v27 = vstv %s21
  %28 = vst [vmem:[#allocation3] sm:$0x1] %v27
  // Predicated region
  $region2: #{vit_regressor_forward.1} parent=0 // pred_check
    _
  $region3: #{vit_regressor_forward.1} parent=0 // pred_check_branch
    %30 = sbr.rel (0) target = $region5
  $region4: #{vit_regressor_forward.1} parent=0 // pred_region
    _
  $region5: #{vit_regressor_forward.1} parent=0 // pred_fallthru
    _
  // Predicated region
  $region6: #{vit_regressor_forward.1} parent=0 // pred_check
    _
  $region7: #{vit_regressor_forward.1} parent=0 // pred_check_branch
    %32 = sbr.rel (0) target = $region9
  $region8: #{vit_regressor_forward.1} parent=0 // pred_region
    _
  $region9: #{vit_regressor_forward.1} parent=0 // pred_fallthru
    _
  // Predicated region
  $region10: #{vit_regressor_forward.1} parent=0 // pred_check
    _
  $region11: #{vit_regressor_forward.1} parent=0 // pred_check_branch
    %34 = sbr.rel (0) target = $region13
  $region12: #{vit_regressor_forward.1} parent=0 // pred_region
    _
  $region13: #{vit_regressor_forward.1} parent=0 // pred_fallthru
    _
  // Predicated region
  $region14: #{vit_regressor_forward.1} parent=0 // pred_check
    _
  $region15: #{vit_regressor_forward.1} parent=0 // pred_check_branch
    %36 = sbr.rel (0) target = $region17
  $region16: #{vit_regressor_forward.1} parent=0 // pred_region
    _
  $region17: #{vit_regressor_forward.1} parent=0 // pred_fallthru
    _
  // Predicated region
  $region18: #{vit_regressor_forward.1} parent=0 // pred_check
    _
  $region19: #{vit_regressor_forward.1} parent=0 // pred_check_branch
    %38 = sbr.rel (0) target = $region21
  $region20: #{vit_regressor_forward.1} parent=0 // pred_region
    _
  $region21: #{vit_regressor_forward.1} parent=0 // pred_fallthru
    _
  // Predicated region
  $region22: #{vit_regressor_forward.1} parent=0 // pred_check
    _
  $region23: #{vit_regressor_forward.1} parent=0 // pred_check_branch
    %40 = sbr.rel (0) target = $region25
  $region24: #{vit_regressor_forward.1} parent=0 // pred_region
    _
  $region25: #{vit_regressor_forward.1} parent=0 // pred_fallthru
    _
  // Predicated region
  $region26: #{vit_regressor_forward.1} parent=0 // pred_check
    _
  $region27: #{vit_regressor_forward.1} parent=0 // pred_check_branch
    %42 = sbr.rel (0) target = $region29
  $region28: #{vit_regressor_forward.1} parent=0 // pred_region
    _
  $region29: #{vit_regressor_forward.1} parent=0 // pred_fallthru
    _
  // Predicated region
  $region30: #{vit_regressor_forward.1} parent=0 // pred_check
    _
  $region31: #{vit_regressor_forward.1} parent=0 // pred_check_branch
    %44 = sbr.rel (0) target = $region33
  $region32: #{vit_regressor_forward.1} parent=0 // pred_region
    _
  $region33: #{vit_regressor_forward.1} parent=0 // pred_fallthru
    _
  // Predicated region
  $region34: #{vit_regressor_forward.1} parent=0 // pred_check
    _
  $region35: #{vit_regressor_forward.1} parent=0 // pred_check_branch
    %46 = sbr.rel (0) target = $region37
  $region36: #{vit_regressor_forward.1} parent=0 // pred_region
    _
  $region37: #{vit_regressor_forward.1} parent=0 // pred_fallthru
    _
  // Predicated region
  $region38: #{vit_regressor_forward.1} parent=0 // pred_check
    _
  $region39: #{vit_regressor_forward.1} parent=0 // pred_check_branch
    %48 = sbr.rel (0) target = $region41
  $region40: #{vit_regressor_forward.1} parent=0 // pred_region
    _
  $region41: #{vit_regressor_forward.1} parent=0 // pred_fallthru
    _
  // Predicated region
  $region42: #{vit_regressor_forward.1} parent=0 // pred_check
    _
  $region43: #{vit_regressor_forward.1} parent=0 // pred_check_branch
    %50 = sbr.rel (0) target = $region45
  $region44: #{vit_regressor_forward.1} parent=0 // pred_region
    _
  $region45: #{vit_regressor_forward.1} parent=0 // pred_fallthru
    _
  // Predicated region
  $region46: #{vit_regressor_forward.1} parent=0 // pred_check
    _
  $region47: #{vit_regressor_forward.1} parent=0 // pred_check_branch
    %52 = sbr.rel (0) target = $region49
  $region48: #{vit_regressor_forward.1} parent=0 // pred_region
    _
  $region49: #{vit_regressor_forward.1} parent=0 // pred_fallthru
    _
  // Predicated region
  $region50: #{vit_regressor_forward.1} parent=0 // pred_check
    _
  $region51: #{vit_regressor_forward.1} parent=0 // pred_check_branch
    %54 = sbr.rel (0) target = $region53
  $region52: #{vit_regressor_forward.1} parent=0 // pred_region
    _
  $region53: #{vit_regressor_forward.1} parent=0 // pred_fallthru
    _
  // Predicated region
  $region54: #{vit_regressor_forward.1} parent=0 // pred_check
    _
  $region55: #{vit_regressor_forward.1} parent=0 // pred_check_branch
    %56 = sbr.rel (0) target = $region57
  $region56: #{vit_regressor_forward.1} parent=0 // pred_region
    _
  $region57: #{vit_regressor_forward.1} parent=0 // pred_fallthru
    _
  // Predicated region
  $region58: #{vit_regressor_forward.1} parent=0 // pred_check
    _
  $region59: #{vit_regressor_forward.1} parent=0 // pred_check_branch
    %58 = sbr.rel (0) target = $region61
  $region60: #{vit_regressor_forward.1} parent=0 // pred_region
    _
  $region61: #{vit_regressor_forward.1} parent=0 // pred_fallthru
    _
  // Predicated region
  $region62: #{vit_regressor_forward.1} parent=0 // pred_check
    _
  $region63: #{vit_regressor_forward.1} parent=0 // pred_check_branch
    %60 = sbr.rel (0) target = $region65
  $region64: #{vit_regressor_forward.1} parent=0 // pred_region
    _
  $region65: #{vit_regressor_forward.1} parent=0 // pred_fallthru
    _
  // Predicated region
  $region66: #{vit_regressor_forward.1} parent=0 // pred_check
    _
  $region67: #{vit_regressor_forward.1} parent=0 // pred_check_branch
    %62 = sbr.rel (0) target = $region69
  $region68: #{vit_regressor_forward.1} parent=0 // pred_region
    _
  $region69: #{vit_regressor_forward.1} parent=0 // pred_fallthru
    _
  // Predicated region
  $region70: #{vit_regressor_forward.1} parent=0 // pred_check
    _
  $region71: #{vit_regressor_forward.1} parent=0 // pred_check_branch
    %64 = sbr.rel (0) target = $region73
  $region72: #{vit_regressor_forward.1} parent=0 // pred_region
    _
  $region73: #{vit_regressor_forward.1} parent=0 // pred_fallthru
    _
  // Predicated region
  $region74: #{vit_regressor_forward.1} parent=0 // pred_check
    _
  $region75: #{vit_regressor_forward.1} parent=0 // pred_check_branch
    %66 = sbr.rel (0) target = $region77
  $region76: #{vit_regressor_forward.1} parent=0 // pred_region
    _
  $region77: #{vit_regressor_forward.1} parent=0 // pred_fallthru
    _
  // Predicated region
  $region78: #{vit_regressor_forward.1} parent=0 // pred_check
    _
  $region79: #{vit_regressor_forward.1} parent=0 // pred_check_branch
    %68 = sbr.rel (0) target = $region81
  $region80: #{vit_regressor_forward.1} parent=0 // pred_region
    _
  $region81: #{vit_regressor_forward.1} parent=0 // pred_fallthru
    _
  // Predicated region
  $region82: #{vit_regressor_forward.1} parent=0 // pred_check
    _
  $region83: #{vit_regressor_forward.1} parent=0 // pred_check_branch
    %70 = sbr.rel (0) target = $region85
  $region84: #{vit_regressor_forward.1} parent=0 // pred_region
    _
  $region85: #{vit_regressor_forward.1} parent=0 // pred_fallthru
    _
  // Predicated region
  $region86: #{vit_regressor_forward.1} parent=0 // pred_check
    _
  $region87: #{vit_regressor_forward.1} parent=0 // pred_check_branch
    %72 = sbr.rel (0) target = $region89
  $region88: #{vit_regressor_forward.1} parent=0 // pred_region
    _
  $region89: #{vit_regressor_forward.1} parent=0 // pred_fallthru
    _
  %v73 = vld [vmem:[%s0] sm:$0xff]
  %v74 = vld [vmem:[%s0 + $0x8] sm:$0xff]
  %v75 = vld [vmem:[%s0 + $0x10] sm:$0xff]
  %v76 = vld [vmem:[%s0 + $0x18] sm:$0xff]
  %v77 = vld [vmem:[%s0 + $0x20] sm:$0xff]
  %v78 = vld [vmem:[%s0 + $0x28] sm:$0xff]
  %v79 = vld [vmem:[%s1] sm:$0xff]
  %v80 = vld [vmem:[%s1 + $0x8] sm:$0xff]
  %v81 = vld [vmem:[%s1 + $0x10] sm:$0xff]
  %v82 = vld [vmem:[%s1 + $0x18] sm:$0xff]
  %v83 = vld [vmem:[%s1 + $0x20] sm:$0xff]
  %v84 = vld [vmem:[%s1 + $0x28] sm:$0xff]
  %v85 = vld [vmem:[%s1 + $0x30] sm:$0xff]
  %v86 = vld [vmem:[%s1 + $0x38] sm:$0xff]
  %v87 = vld [vmem:[%s1 + $0x40] sm:$0xff]
  %v88 = vld [vmem:[%s1 + $0x48] sm:$0xff]
  %v89 = vld [vmem:[%s1 + $0x50] sm:$0xff]
  %v90 = vld [vmem:[%s1 + $0x58] sm:$0xff]
  %v91 = vld [vmem:[%s1 + $0x60] sm:$0xff]
  %v92 = vld [vmem:[%s1 + $0x68] sm:$0xff]
  %v93 = vld [vmem:[%s1 + $0x70] sm:$0xff]
  %v94 = vld [vmem:[%s1 + $0x78] sm:$0xff]
  %v95 = vld [vmem:[%s1 + $0x80] sm:$0xff]
  %v96 = vld [vmem:[%s1 + $0x88] sm:$0xff]
  %v97 = vld [vmem:[%s1 + $0x90] sm:$0xff]
  %v98 = vld [vmem:[%s1 + $0x98] sm:$0xff]
  %v99 = vld [vmem:[%s1 + $0xa0] sm:$0xff]
  %v100 = vld [vmem:[%s1 + $0xa8] sm:$0xff]
  %v101 = vld [vmem:[%s1 + $0xb0] sm:$0xff]
  %v102 = vld [vmem:[%s1 + $0xb8] sm:$0xff]
  %v103 = vld [vmem:[%s1 + $0xc0] sm:$0xff]
  %v104 = vld [vmem:[%s1 + $0xc8] sm:$0xff]
  %v105 = vld [vmem:[%s1 + $0xd0] sm:$0xff]
  %v106 = vld [vmem:[%s1 + $0xd8] sm:$0xff]
  %v107 = vld [vmem:[%s1 + $0xe0] sm:$0xff]
  %v108 = vld [vmem:[%s1 + $0xe8] sm:$0xff]
  %v109 = vld [vmem:[%s1 + $0xf0] sm:$0xff]
  %v110 = vld [vmem:[%s1 + $0xf8] sm:$0xff]
  %v111 = vld [vmem:[%s1 + $0x100] sm:$0xff]
  %v112 = vld [vmem:[%s1 + $0x108] sm:$0xff]
  %v113 = vld [vmem:[%s1 + $0x110] sm:$0xff]
  %v114 = vld [vmem:[%s1 + $0x118] sm:$0xff]
  %v115 = vld [vmem:[%s1 + $0x120] sm:$0xff]
  %v116 = vld [vmem:[%s1 + $0x128] sm:$0xff]
  %v117 = vld [vmem:[%s1 + $0x130] sm:$0xff]
  %v118 = vld [vmem:[%s1 + $0x138] sm:$0xff]
  %v119 = vld [vmem:[%s1 + $0x140] sm:$0xff]
  %v120 = vld [vmem:[%s1 + $0x148] sm:$0xff]
  %v121 = vld [vmem:[%s1 + $0x150] sm:$0xff]
  %v122 = vld [vmem:[%s1 + $0x158] sm:$0xff]
  %v123 = vld [vmem:[%s1 + $0x160] sm:$0xff]
  %v124 = vld [vmem:[%s1 + $0x168] sm:$0xff]
  %v125 = vld [vmem:[%s1 + $0x170] sm:$0xff]
  %v126 = vld [vmem:[%s1 + $0x178] sm:$0xff]
  %v127 = vld [vmem:[%s1 + $0x180] sm:$0xff]
  %v128 = vld [vmem:[%s1 + $0x188] sm:$0xff]
  %v129 = vld [vmem:[%s1 + $0x190] sm:$0xff]
  %v130 = vld [vmem:[%s1 + $0x198] sm:$0xff]
  %v131 = vld [vmem:[%s1 + $0x1a0] sm:$0xff]
  %v132 = vld [vmem:[%s1 + $0x1a8] sm:$0xff]
  %v133 = vld [vmem:[%s1 + $0x1b0] sm:$0xff]
  %v134 = vld [vmem:[%s1 + $0x1b8] sm:$0xff]
  %v135 = vld [vmem:[%s1 + $0x1c0] sm:$0xff]
  %v136 = vld [vmem:[%s1 + $0x1c8] sm:$0xff]
  %v137 = vld [vmem:[%s1 + $0x1d0] sm:$0xff]
  %v138 = vld [vmem:[%s1 + $0x1d8] sm:$0xff]
  %v139 = vld [vmem:[%s1 + $0x1e0] sm:$0xff]
  %v140 = vld [vmem:[%s1 + $0x1e8] sm:$0xff]
  %v141 = vld [vmem:[%s1 + $0x1f0] sm:$0xff]
  %v142 = vld [vmem:[%s1 + $0x1f8] sm:$0xff]
  %v143 = vld [vmem:[%s1 + $0x200] sm:$0xff]
  %v144 = vld [vmem:[%s1 + $0x208] sm:$0xff]
  %v145 = vld [vmem:[%s1 + $0x210] sm:$0xff]
  %v146 = vld [vmem:[%s1 + $0x218] sm:$0xff]
  %v147 = vld [vmem:[%s1 + $0x220] sm:$0xff]
  %v148 = vld [vmem:[%s1 + $0x228] sm:$0xff]
  %v149 = vld [vmem:[%s1 + $0x230] sm:$0xff]
  %v150 = vld [vmem:[%s1 + $0x238] sm:$0xff]
  %v151 = vld [vmem:[%s1 + $0x240] sm:$0xff]
  %v152 = vld [vmem:[%s1 + $0x248] sm:$0xff]
  %v153 = vld [vmem:[%s1 + $0x250] sm:$0xff]
  %v154 = vld [vmem:[%s1 + $0x258] sm:$0xff]
  %v155 = vld [vmem:[%s1 + $0x260] sm:$0xff]
  %v156 = vld [vmem:[%s1 + $0x268] sm:$0xff]
  %v157 = vld [vmem:[%s1 + $0x270] sm:$0xff]
  %v158 = vld [vmem:[%s1 + $0x278] sm:$0xff]
  %v159 = vld [vmem:[%s1 + $0x280] sm:$0xff]
  %v160 = vld [vmem:[%s1 + $0x288] sm:$0xff]
  %v161 = vld [vmem:[%s1 + $0x290] sm:$0xff]
  %v162 = vld [vmem:[%s1 + $0x298] sm:$0xff]
  %v163 = vld [vmem:[%s1 + $0x2a0] sm:$0xff]
  %v164 = vld [vmem:[%s1 + $0x2a8] sm:$0xff]
  %v165 = vld [vmem:[%s1 + $0x2b0] sm:$0xff]
  %v166 = vld [vmem:[%s1 + $0x2b8] sm:$0xff]
  %v167 = vld [vmem:[%s1 + $0x2c0] sm:$0xff]
  %v168 = vld [vmem:[%s1 + $0x2c8] sm:$0xff]
  %v169 = vld [vmem:[%s1 + $0x2d0] sm:$0xff]
  %v170 = vld [vmem:[%s1 + $0x2d8] sm:$0xff]
  %v171 = vld [vmem:[%s1 + $0x2e0] sm:$0xff]
  %v172 = vld [vmem:[%s1 + $0x2e8] sm:$0xff]
  %v173 = vld [vmem:[%s1 + $0x2f0] sm:$0xff]
  %v174 = vld [vmem:[%s1 + $0x2f8] sm:$0xff]
  %v175 = vld [vmem:[%s2] sm:$0x1]
  %v177 = vperm.slane %v175, 0
  %179 = vmatpush.msra.mxu0 %v94
  %180 = vmatpush.msra.mxu0 %v93
  %181 = vmatpush.msra.mxu0 %v92
  %182 = vmatpush.msra.mxu0 %v91
  %183 = vmatpush.msra.mxu0 %v90
  %184 = vmatpush.msra.mxu0 %v89
  %185 = vmatpush.msra.mxu0 %v88
  %186 = vmatpush.msra.mxu0 %v87
  %187 = vmatpush.msra.mxu0 %v86
  %188 = vmatpush.msra.mxu0 %v85
  %189 = vmatpush.msra.mxu0 %v84
  %190 = vmatpush.msra.mxu0 %v83
  %191 = vmatpush.msra.mxu0 %v82
  %192 = vmatpush.msra.mxu0 %v81
  %193 = vmatpush.msra.mxu0 %v80
  %194 = vmatpush.msra.mxu0 %v79
  %195 = vmatmul.f32.gmra.mxu0 %v73
  %v196 = vpop.f32.mrf.mxu0
  %v197 = vadd.f32 %v177, %v196
  %198 = vdwg.mxu0
  %199 = vmatpush.msra.mxu0 %v110
  %200 = vmatpush.msra.mxu0 %v109
  %201 = vmatpush.msra.mxu0 %v108
  %202 = vmatpush.msra.mxu0 %v107
  %203 = vmatpush.msra.mxu0 %v106
  %204 = vmatpush.msra.mxu0 %v105
  %205 = vmatpush.msra.mxu0 %v104
  %206 = vmatpush.msra.mxu0 %v103
  %207 = vmatpush.msra.mxu0 %v102
  %208 = vmatpush.msra.mxu0 %v101
  %209 = vmatpush.msra.mxu0 %v100
  %210 = vmatpush.msra.mxu0 %v99
  %211 = vmatpush.msra.mxu0 %v98
  %212 = vmatpush.msra.mxu0 %v97
  %213 = vmatpush.msra.mxu0 %v96
  %214 = vmatpush.msra.mxu0 %v95
  %215 = vmatmul.f32.gmra.mxu0 %v74
  %v216 = vpop.f32.mrf.mxu0
  %v217 = vadd.f32 %v197, %v216
  %218 = vdwg.mxu0
  %219 = vmatpush.msra.mxu0 %v126
  %220 = vmatpush.msra.mxu0 %v125
  %221 = vmatpush.msra.mxu0 %v124
  %222 = vmatpush.msra.mxu0 %v123
  %223 = vmatpush.msra.mxu0 %v122
  %224 = vmatpush.msra.mxu0 %v121
  %225 = vmatpush.msra.mxu0 %v120
  %226 = vmatpush.msra.mxu0 %v119
  %227 = vmatpush.msra.mxu0 %v118
  %228 = vmatpush.msra.mxu0 %v117
  %229 = vmatpush.msra.mxu0 %v116
  %230 = vmatpush.msra.mxu0 %v115
  %231 = vmatpush.msra.mxu0 %v114
  %232 = vmatpush.msra.mxu0 %v113
  %233 = vmatpush.msra.mxu0 %v112
  %234 = vmatpush.msra.mxu0 %v111
  %235 = vmatmul.f32.gmra.mxu0 %v75
  %v236 = vpop.f32.mrf.mxu0
  %v237 = vadd.f32 %v217, %v236
  %238 = vdwg.mxu0
  %239 = vmatpush.msra.mxu0 %v142
  %240 = vmatpush.msra.mxu0 %v141
  %241 = vmatpush.msra.mxu0 %v140
  %242 = vmatpush.msra.mxu0 %v139
  %243 = vmatpush.msra.mxu0 %v138
  %244 = vmatpush.msra.mxu0 %v137
  %245 = vmatpush.msra.mxu0 %v136
  %246 = vmatpush.msra.mxu0 %v135
  %247 = vmatpush.msra.mxu0 %v134
  %248 = vmatpush.msra.mxu0 %v133
  %249 = vmatpush.msra.mxu0 %v132
  %250 = vmatpush.msra.mxu0 %v131
  %251 = vmatpush.msra.mxu0 %v130
  %252 = vmatpush.msra.mxu0 %v129
  %253 = vmatpush.msra.mxu0 %v128
  %254 = vmatpush.msra.mxu0 %v127
  %255 = vmatmul.f32.gmra.mxu0 %v76
  %v256 = vpop.f32.mrf.mxu0
  %v257 = vadd.f32 %v237, %v256
  %258 = vdwg.mxu0
  %259 = vmatpush.msra.mxu0 %v158
  %260 = vmatpush.msra.mxu0 %v157
  %261 = vmatpush.msra.mxu0 %v156
  %262 = vmatpush.msra.mxu0 %v155
  %263 = vmatpush.msra.mxu0 %v154
  %264 = vmatpush.msra.mxu0 %v153
  %265 = vmatpush.msra.mxu0 %v152
  %266 = vmatpush.msra.mxu0 %v151
  %267 = vmatpush.msra.mxu0 %v150
  %268 = vmatpush.msra.mxu0 %v149
  %269 = vmatpush.msra.mxu0 %v148
  %270 = vmatpush.msra.mxu0 %v147
  %271 = vmatpush.msra.mxu0 %v146
  %272 = vmatpush.msra.mxu0 %v145
  %273 = vmatpush.msra.mxu0 %v144
  %274 = vmatpush.msra.mxu0 %v143
  %275 = vmatmul.f32.gmra.mxu0 %v77
  %v276 = vpop.f32.mrf.mxu0
  %v277 = vadd.f32 %v257, %v276
  %278 = vdwg.mxu0
  %279 = vmatpush.msra.mxu0 %v174
  %280 = vmatpush.msra.mxu0 %v173
  %281 = vmatpush.msra.mxu0 %v172
  %282 = vmatpush.msra.mxu0 %v171
  %283 = vmatpush.msra.mxu0 %v170
  %284 = vmatpush.msra.mxu0 %v169
  %285 = vmatpush.msra.mxu0 %v168
  %286 = vmatpush.msra.mxu0 %v167
  %287 = vmatpush.msra.mxu0 %v166
  %288 = vmatpush.msra.mxu0 %v165
  %289 = vmatpush.msra.mxu0 %v164
  %290 = vmatpush.msra.mxu0 %v163
  %291 = vmatpush.msra.mxu0 %v162
  %292 = vmatpush.msra.mxu0 %v161
  %293 = vmatpush.msra.mxu0 %v160
  %294 = vmatpush.msra.mxu0 %v159
  %295 = vmatmul.f32.gmra.mxu0 %v78
  %v296 = vpop.f32.mrf.mxu0
  %v297 = vadd.f32 %v277, %v296
  %298 = vdwg.mxu0
  %v299 = vld [vmem:[%s3] sm:$0x1]
  %v300 = vld [vmem:[%s4] sm:$0x1]
  %v301 = vadd.f32 %v299, %v300
  %v302 = vld [vmem:[%s4 + $0x1] sm:$0xf]
  %vm303 = vcmask 253952
  %304 = vst.msk [vmem:[#allocation2] sm:$0x1] %vm303, %v301
  %v305 = vadd.f32 %v297, %v302
  %vm306 = vcmask 257024
  %307 = vst.msk [vmem:[#allocation2 + $0x1] sm:$0xf] %vm306, %v305
  %308 = vst.msk [vmem:[#allocation2 + $0x5] sm:$0x1] %vm303, %v301
  %v310 = vrot.slane %v302, 4
  %v312 = vadd.f32 %v297, %v310
  %vm313 = vcmask 261124
  %314 = vst.msk [vmem:[#allocation2 + $0x2] sm:$0xf0] %vm313, %v312
  %v315 = vld [vmem:[#allocation2] sm:$0xff]
  %v316 = vld [vmem:[#allocation2 + $0x8] sm:$0x3]
  %v317 = vld [vmem:[%s5] sm:$0xff]
  %v318 = vld [vmem:[%s5 + $0x8] sm:$0x3]
  %v319 = vld [vmem:[%s6] sm:$0x1]
  %v320 = vld [vmem:[%s7] sm:$0x1]
  %vm321 = vcmask 261120
  %v322 = vsel %vm321, %v315, 0.0
  %323 = vadd.xlane.f32.xlu0 %v322
  %v324 = vpop.xlane.xlu0 %323
  %vm325 = vcmask 254976
  %v326 = vsel %vm325, %v316, 0.0
  %327 = vadd.xlane.f32.xlu0 %v326
  %v328 = vpop.xlane.xlu0 %327
  %v329 = vrcp.pop 32.0
  %v330 = vmul.f32 32.0, %v329
  %v331 = vsub.f32 1.0, %v330
  %v332 = vmul.f32 %v329, %v331
  %v333 = vadd.f32 %v329, %v332
  %vm334 = vweird.f32 %v329
  %v335 = vsel %vm334, %v329, %v333
  %v336 = vmul.f32 %v324, %v335
  %v337 = vmul.f32 %v328, %v335
  %v338 = vsub.f32 %v315, %v336
  %v339 = vsub.f32 %v316, %v337
  %v340 = vmul.f32 %v338, %v338
  %v341 = vmul.f32 %v339, %v339
  %v342 = vsel %vm321, %v340, 0.0
  %343 = vadd.xlane.f32.xlu0 %v342
  %v344 = vpop.xlane.xlu0 %343
  %v345 = vsel %vm325, %v341, 0.0
  %346 = vadd.xlane.f32.xlu0 %v345
  %v347 = vpop.xlane.xlu0 %346
  %v348 = vmul.f32 %v344, %v335
  %v349 = vmul.f32 %v347, %v335
  %v350 = vadd.f32 %v348, 1e-06
  %v351 = vadd.f32 %v349, 1e-06
  %v352 = vrsqrt.pop %v350
  %v353 = vmul.f32 %v352, %v350
  %v354 = vmul.f32 %v353, %v352
  %v355 = vmul.f32 0.5, %v354
  %v356 = vsub.f32 1.5, %v355
  %v357 = vmul.f32 %v352, %v356
  %vm358 = vweird.f32 %v350
  %vm359 = vweird.f32 %v352
  %vm360 = vmor %vm358, %vm359
  %v361 = vsel %vm360, %v352, %v357
  %v362 = vrsqrt.pop %v351
  %v363 = vmul.f32 %v362, %v351
  %v364 = vmul.f32 %v363, %v362
  %v365 = vmul.f32 0.5, %v364
  %v366 = vsub.f32 1.5, %v365
  %v367 = vmul.f32 %v362, %v366
  %vm368 = vweird.f32 %v351
  %vm369 = vweird.f32 %v362
  %vm370 = vmor %vm368, %vm369
  %v371 = vsel %vm370, %v362, %v367
  %v372 = vmul.f32 %v338, %v361
  %v373 = vmul.f32 %v339, %v371
  %v374 = vperm.slane %v319, 0
  %v375 = vmul.f32 %v372, %v374
  %v376 = vmul.f32 %v373, %v374
  %v377 = vperm.slane %v320, 0
  %v378 = vadd.f32 %v375, %v377
  %v379 = vadd.f32 %v376, %v377
  %v380 = vld [vmem:[%s8] sm:$0xff]
  %v381 = vld [vmem:[%s8 + $0x8] sm:$0xff]
  %v382 = vld [vmem:[%s8 + $0x10] sm:$0xff]
  %v383 = vld [vmem:[%s8 + $0x18] sm:$0xff]
  %v384 = vld [vmem:[%s9] sm:$0x1]
  %v385 = vperm.slane %v384, 0
  %v387 = vsel %vm321, %v378, 0
  %v390 = vsel %vm321, %v379, 0
  %392 = vmatpush.msra.mxu0 0.0
  %393 = vmatpush.msra.mxu0 0.0
  %394 = vmatpush.msra.mxu0 0.0
  %395 = vmatpush.msra.mxu0 0.0
  %396 = vmatpush.msra.mxu0 0.0
  %397 = vmatpush.msra.mxu0 0.0
  %398 = vmatpush.msra.mxu0 0.0
  %399 = vmatpush.msra.mxu0 0.0
  %400 = vmatpush.msra.mxu0 0.0
  %401 = vmatpush.msra.mxu0 0.0
  %402 = vmatpush.msra.mxu0 0.0
  %403 = vmatpush.msra.mxu0 0.0
  %404 = vmatpush.msra.mxu0 %v383
  %405 = vmatpush.msra.mxu0 %v382
  %406 = vmatpush.msra.mxu0 %v381
  %407 = vmatpush.msra.mxu0 %v380
  %408 = vmatmul.f32.gmra.mxu0 %v387
  %v409 = vpop.f32.mrf.mxu0
  %v410 = vadd.f32 %v385, %v409
  %411 = vmatmul.f32.gmra.mxu0 %v390
  %v412 = vpop.f32.mrf.mxu0
  %v413 = vadd.f32 %v385, %v412
  %414 = vdwg.mxu0
  %417 = vrot.lane.b32.xlu0 %v410, 96
  %v418 = vpop.permute.xlu0 %417
  %419 = vrot.lane.b32.xlu0 %v413, 96
  %v420 = vpop.permute.xlu0 %419
  %vm421 = vcmask 64512
  %v422 = vsel %vm421, %v410, 0
  %v424 = vsel %vm421, %v413, 0
  %v426 = vsel %vm421, %v418, 0
  %v428 = vsel %vm421, %v420, 0
  %430 = vmatpush.xpose.msra.mxu0 0.0
  %431 = vmatpush.xpose.msra.mxu0 0.0
  %432 = vmatpush.xpose.msra.mxu0 0.0
  %433 = vmatpush.xpose.msra.mxu0 0.0
  %434 = vmatpush.xpose.msra.mxu0 0.0
  %435 = vmatpush.xpose.msra.mxu0 0.0
  %436 = vmatpush.xpose.msra.mxu0 0.0
  %437 = vmatpush.xpose.msra.mxu0 0.0
  %438 = vmatpush.xpose.msra.mxu0 0.0
  %439 = vmatpush.xpose.msra.mxu0 0.0
  %440 = vmatpush.xpose.msra.mxu0 0.0
  %441 = vmatpush.xpose.msra.mxu0 0.0
  %442 = vmatpush.xpose.msra.mxu0 0.0
  %443 = vmatpush.xpose.msra.mxu0 0.0
  %444 = vmatpush.xpose.msra.mxu0 %v428
  %445 = vmatpush.xpose.msra.mxu0 %v426
  %446 = vmatmul.f32.gmra.mxu0 %v422
  %v447 = vpop.f32.mrf.mxu0
  %v448 = vadd.f32 0.0, %v447
  %449 = vmatmul.f32.gmra.mxu0 %v424
  %v450 = vpop.f32.mrf.mxu0
  %v451 = vadd.f32 0.0, %v450
  %452 = vdwg.mxu0
  %v453 = vmul.f32 %v448, 0.35355338
  %v454 = vmul.f32 %v451, 0.35355338
  %v455 = vadd.f32 %v453, %v317
  %v456 = vadd.f32 %v454, %v318
  %vm457 = vcmask 80896
  %v458 = vsel %vm457, %v455, -inf
  %459 = vmax.xlane.f32.xlu0 %v458
  %v460 = vpop.xlane.xlu0 %459
  %vm461 = vcmask 74752
  %v462 = vsel %vm461, %v456, -inf
  %463 = vmax.xlane.f32.xlu0 %v462
  %v464 = vpop.xlane.xlu0 %463
  %v465 = vsub.f32 %v455, %v460
  %v466 = vsub.f32 %v456, %v464
  %v467 = vmul.f32 %v465, 1.442695
  %v468 = vpow.pop %v467
  %v469 = vmul.f32 %v466, 1.442695
  %v470 = vpow.pop %v469
  %v471 = vsel %vm457, %v468, 0.0
  %472 = vadd.xlane.f32.xlu0 %v471
  %v473 = vpop.xlane.xlu0 %472
  %v474 = vsel %vm461, %v470, 0.0
  %475 = vadd.xlane.f32.xlu0 %v474
  %v476 = vpop.xlane.xlu0 %475
  %v477 = vrcp.pop %v473
  %v478 = vrcp.pop %v476
  %v479 = vmul.f32 %v468, %v477
  %v480 = vmul.f32 %v470, %v478
  %481 = vrot.lane.b32.xlu0 %v410, 64
  %v482 = vpop.permute.xlu0 %481
  %483 = vrot.lane.b32.xlu0 %v413, 64
  %v484 = vpop.permute.xlu0 %483
  %v487 = vsel %vm457, %v479, 0
  %v490 = vsel %vm457, %v480, 0
  %vm492 = vcmask 1041408
  %v493 = vsel %vm492, %v484, 0
  %495 = vmatpush.msra.mxu0 0.0
  %496 = vmatpush.msra.mxu0 0.0
  %497 = vmatpush.msra.mxu0 0.0
  %498 = vmatpush.msra.mxu0 0.0
  %499 = vmatpush.msra.mxu0 0.0
  %500 = vmatpush.msra.mxu0 0.0
  %501 = vmatpush.msra.mxu0 0.0
  %502 = vmatpush.msra.mxu0 0.0
  %503 = vmatpush.msra.mxu0 0.0
  %504 = vmatpush.msra.mxu0 0.0
  %505 = vmatpush.msra.mxu0 0.0
  %506 = vmatpush.msra.mxu0 0.0
  %507 = vmatpush.msra.mxu0 0.0
  %508 = vmatpush.msra.mxu0 0.0
  %509 = vmatpush.msra.mxu0 %v493
  %510 = vmatpush.msra.mxu0 %v482
  %511 = vmatmul.f32.gmra.mxu0 %v487
  %v512 = vpop.f32.mrf.mxu0
  %v513 = vadd.f32 0.0, %v512
  %514 = vmatmul.f32.gmra.mxu0 %v490
  %v515 = vpop.f32.mrf.mxu0
  %v516 = vadd.f32 0.0, %v515
  %517 = vdwg.mxu0
  %518 = vrot.lane.b32.xlu0 %v410, 120
  %v519 = vpop.permute.xlu0 %518
  %520 = vrot.lane.b32.xlu0 %v413, 120
  %v521 = vpop.permute.xlu0 %520
  %522 = vrot.lane.b32.xlu0 %v410, 88
  %v523 = vpop.permute.xlu0 %522
  %524 = vrot.lane.b32.xlu0 %v413, 88
  %v525 = vpop.permute.xlu0 %524
  %v526 = vsel %vm421, %v519, 0
  %v528 = vsel %vm421, %v521, 0
  %v530 = vsel %vm421, %v523, 0
  %v532 = vsel %vm421, %v525, 0
  %534 = vmatpush.xpose.msra.mxu0 0.0
  %535 = vmatpush.xpose.msra.mxu0 0.0
  %536 = vmatpush.xpose.msra.mxu0 0.0
  %537 = vmatpush.xpose.msra.mxu0 0.0
  %538 = vmatpush.xpose.msra.mxu0 0.0
  %539 = vmatpush.xpose.msra.mxu0 0.0
  %540 = vmatpush.xpose.msra.mxu0 0.0
  %541 = vmatpush.xpose.msra.mxu0 0.0
  %542 = vmatpush.xpose.msra.mxu0 0.0
  %543 = vmatpush.xpose.msra.mxu0 0.0
  %544 = vmatpush.xpose.msra.mxu0 0.0
  %545 = vmatpush.xpose.msra.mxu0 0.0
  %546 = vmatpush.xpose.msra.mxu0 0.0
  %547 = vmatpush.xpose.msra.mxu0 0.0
  %548 = vmatpush.xpose.msra.mxu0 %v532
  %549 = vmatpush.xpose.msra.mxu0 %v530
  %550 = vmatmul.f32.gmra.mxu0 %v526
  %v551 = vpop.f32.mrf.mxu0
  %v552 = vadd.f32 0.0, %v551
  %553 = vmatmul.f32.gmra.mxu0 %v528
  %v554 = vpop.f32.mrf.mxu0
  %v555 = vadd.f32 0.0, %v554
  %556 = vdwg.mxu0
  %v557 = vmul.f32 %v552, 0.35355338
  %v558 = vmul.f32 %v555, 0.35355338
  %v559 = vadd.f32 %v557, %v317
  %v560 = vadd.f32 %v558, %v318
  %v561 = vsel %vm457, %v559, -inf
  %562 = vmax.xlane.f32.xlu0 %v561
  %v563 = vpop.xlane.xlu0 %562
  %v564 = vsel %vm461, %v560, -inf
  %565 = vmax.xlane.f32.xlu0 %v564
  %v566 = vpop.xlane.xlu0 %565
  %v567 = vsub.f32 %v559, %v563
  %v568 = vsub.f32 %v560, %v566
  %v569 = vmul.f32 %v567, 1.442695
  %v570 = vpow.pop %v569
  %v571 = vmul.f32 %v568, 1.442695
  %v572 = vpow.pop %v571
  %v573 = vsel %vm457, %v570, 0.0
  %574 = vadd.xlane.f32.xlu0 %v573
  %v575 = vpop.xlane.xlu0 %574
  %v576 = vsel %vm461, %v572, 0.0
  %577 = vadd.xlane.f32.xlu0 %v576
  %v578 = vpop.xlane.xlu0 %577
  %v579 = vrcp.pop %v575
  %v580 = vrcp.pop %v578
  %v581 = vmul.f32 %v570, %v579
  %v582 = vmul.f32 %v572, %v580
  %583 = vrot.lane.b32.xlu0 %v410, 56
  %v584 = vpop.permute.xlu0 %583
  %585 = vrot.lane.b32.xlu0 %v413, 56
  %v586 = vpop.permute.xlu0 %585
  %v589 = vsel %vm457, %v581, 0
  %v592 = vsel %vm457, %v582, 0
  %v594 = vsel %vm492, %v586, 0
  %596 = vmatpush.msra.mxu0 0.0
  %597 = vmatpush.msra.mxu0 0.0
  %598 = vmatpush.msra.mxu0 0.0
  %599 = vmatpush.msra.mxu0 0.0
  %600 = vmatpush.msra.mxu0 0.0
  %601 = vmatpush.msra.mxu0 0.0
  %602 = vmatpush.msra.mxu0 0.0
  %603 = vmatpush.msra.mxu0 0.0
  %604 = vmatpush.msra.mxu0 0.0
  %605 = vmatpush.msra.mxu0 0.0
  %606 = vmatpush.msra.mxu0 0.0
  %607 = vmatpush.msra.mxu0 0.0
  %608 = vmatpush.msra.mxu0 0.0
  %609 = vmatpush.msra.mxu0 0.0
  %610 = vmatpush.msra.mxu0 %v594
  %611 = vmatpush.msra.mxu0 %v584
  %612 = vmatmul.f32.gmra.mxu0 %v589
  %v613 = vpop.f32.mrf.mxu0
  %v614 = vadd.f32 0.0, %v613
  %615 = vmatmul.f32.gmra.mxu0 %v592
  %v616 = vpop.f32.mrf.mxu0
  %v617 = vadd.f32 0.0, %v616
  %618 = vdwg.mxu0
  %619 = vrot.lane.b32.xlu0 %v410, 112
  %v620 = vpop.permute.xlu0 %619
  %621 = vrot.lane.b32.xlu0 %v413, 112
  %v622 = vpop.permute.xlu0 %621
  %623 = vrot.lane.b32.xlu0 %v410, 80
  %v624 = vpop.permute.xlu0 %623
  %625 = vrot.lane.b32.xlu0 %v413, 80
  %v626 = vpop.permute.xlu0 %625
  %v627 = vsel %vm421, %v620, 0
  %v629 = vsel %vm421, %v622, 0
  %v631 = vsel %vm421, %v624, 0
  %v633 = vsel %vm421, %v626, 0
  %635 = vmatpush.xpose.msra.mxu0 0.0
  %636 = vmatpush.xpose.msra.mxu0 0.0
  %637 = vmatpush.xpose.msra.mxu0 0.0
  %638 = vmatpush.xpose.msra.mxu0 0.0
  %639 = vmatpush.xpose.msra.mxu0 0.0
  %640 = vmatpush.xpose.msra.mxu0 0.0
  %641 = vmatpush.xpose.msra.mxu0 0.0
  %642 = vmatpush.xpose.msra.mxu0 0.0
  %643 = vmatpush.xpose.msra.mxu0 0.0
  %644 = vmatpush.xpose.msra.mxu0 0.0
  %645 = vmatpush.xpose.msra.mxu0 0.0
  %646 = vmatpush.xpose.msra.mxu0 0.0
  %647 = vmatpush.xpose.msra.mxu0 0.0
  %648 = vmatpush.xpose.msra.mxu0 0.0
  %649 = vmatpush.xpose.msra.mxu0 %v633
  %650 = vmatpush.xpose.msra.mxu0 %v631
  %651 = vmatmul.f32.gmra.mxu0 %v627
  %v652 = vpop.f32.mrf.mxu0
  %v653 = vadd.f32 0.0, %v652
  %654 = vmatmul.f32.gmra.mxu0 %v629
  %v655 = vpop.f32.mrf.mxu0
  %v656 = vadd.f32 0.0, %v655
  %657 = vdwg.mxu0
  %v658 = vmul.f32 %v653, 0.35355338
  %v659 = vmul.f32 %v656, 0.35355338
  %v660 = vadd.f32 %v658, %v317
  %v661 = vadd.f32 %v659, %v318
  %v662 = vsel %vm457, %v660, -inf
  %663 = vmax.xlane.f32.xlu0 %v662
  %v664 = vpop.xlane.xlu0 %663
  %v665 = vsel %vm461, %v661, -inf
  %666 = vmax.xlane.f32.xlu0 %v665
  %v667 = vpop.xlane.xlu0 %666
  %v668 = vsub.f32 %v660, %v664
  %v669 = vsub.f32 %v661, %v667
  %v670 = vmul.f32 %v668, 1.442695
  %v671 = vpow.pop %v670
  %v672 = vmul.f32 %v669, 1.442695
  %v673 = vpow.pop %v672
  %v674 = vsel %vm457, %v671, 0.0
  %675 = vadd.xlane.f32.xlu0 %v674
  %v676 = vpop.xlane.xlu0 %675
  %v677 = vsel %vm461, %v673, 0.0
  %678 = vadd.xlane.f32.xlu0 %v677
  %v679 = vpop.xlane.xlu0 %678
  %v680 = vrcp.pop %v676
  %v681 = vrcp.pop %v679
  %v682 = vmul.f32 %v671, %v680
  %v683 = vmul.f32 %v673, %v681
  %684 = vrot.lane.b32.xlu0 %v410, 48
  %v685 = vpop.permute.xlu0 %684
  %686 = vrot.lane.b32.xlu0 %v413, 48
  %v687 = vpop.permute.xlu0 %686
  %v690 = vsel %vm457, %v682, 0
  %v693 = vsel %vm457, %v683, 0
  %v695 = vsel %vm492, %v687, 0
  %697 = vmatpush.msra.mxu0 0.0
  %698 = vmatpush.msra.mxu0 0.0
  %699 = vmatpush.msra.mxu0 0.0
  %700 = vmatpush.msra.mxu0 0.0
  %701 = vmatpush.msra.mxu0 0.0
  %702 = vmatpush.msra.mxu0 0.0
  %703 = vmatpush.msra.mxu0 0.0
  %704 = vmatpush.msra.mxu0 0.0
  %705 = vmatpush.msra.mxu0 0.0
  %706 = vmatpush.msra.mxu0 0.0
  %707 = vmatpush.msra.mxu0 0.0
  %708 = vmatpush.msra.mxu0 0.0
  %709 = vmatpush.msra.mxu0 0.0
  %710 = vmatpush.msra.mxu0 0.0
  %711 = vmatpush.msra.mxu0 %v695
  %712 = vmatpush.msra.mxu0 %v685
  %713 = vmatmul.f32.gmra.mxu0 %v690
  %v714 = vpop.f32.mrf.mxu0
  %v715 = vadd.f32 0.0, %v714
  %716 = vmatmul.f32.gmra.mxu0 %v693
  %v717 = vpop.f32.mrf.mxu0
  %v718 = vadd.f32 0.0, %v717
  %719 = vdwg.mxu0
  %720 = vrot.lane.b32.xlu0 %v410, 104
  %v721 = vpop.permute.xlu0 %720
  %722 = vrot.lane.b32.xlu0 %v413, 104
  %v723 = vpop.permute.xlu0 %722
  %724 = vrot.lane.b32.xlu0 %v410, 72
  %v725 = vpop.permute.xlu0 %724
  %726 = vrot.lane.b32.xlu0 %v413, 72
  %v727 = vpop.permute.xlu0 %726
  %v728 = vsel %vm421, %v721, 0
  %v730 = vsel %vm421, %v723, 0
  %v732 = vsel %vm421, %v725, 0
  %v734 = vsel %vm421, %v727, 0
  %736 = vmatpush.xpose.msra.mxu0 0.0
  %737 = vmatpush.xpose.msra.mxu0 0.0
  %738 = vmatpush.xpose.msra.mxu0 0.0
  %739 = vmatpush.xpose.msra.mxu0 0.0
  %740 = vmatpush.xpose.msra.mxu0 0.0
  %741 = vmatpush.xpose.msra.mxu0 0.0
  %742 = vmatpush.xpose.msra.mxu0 0.0
  %743 = vmatpush.xpose.msra.mxu0 0.0
  %744 = vmatpush.xpose.msra.mxu0 0.0
  %745 = vmatpush.xpose.msra.mxu0 0.0
  %746 = vmatpush.xpose.msra.mxu0 0.0
  %747 = vmatpush.xpose.msra.mxu0 0.0
  %748 = vmatpush.xpose.msra.mxu0 0.0
  %749 = vmatpush.xpose.msra.mxu0 0.0
  %750 = vmatpush.xpose.msra.mxu0 %v734
  %751 = vmatpush.xpose.msra.mxu0 %v732
  %752 = vmatmul.f32.gmra.mxu0 %v728
  %v753 = vpop.f32.mrf.mxu0
  %v754 = vadd.f32 0.0, %v753
  %755 = vmatmul.f32.gmra.mxu0 %v730
  %v756 = vpop.f32.mrf.mxu0
  %v757 = vadd.f32 0.0, %v756
  %758 = vdwg.mxu0
  %v759 = vmul.f32 %v754, 0.35355338
  %v760 = vmul.f32 %v757, 0.35355338
  %v761 = vadd.f32 %v759, %v317
  %v762 = vadd.f32 %v760, %v318
  %v763 = vsel %vm457, %v761, -inf
  %764 = vmax.xlane.f32.xlu0 %v763
  %v765 = vpop.xlane.xlu0 %764
  %v766 = vsel %vm461, %v762, -inf
  %767 = vmax.xlane.f32.xlu0 %v766
  %v768 = vpop.xlane.xlu0 %767
  %v769 = vsub.f32 %v761, %v765
  %v770 = vsub.f32 %v762, %v768
  %v771 = vmul.f32 %v769, 1.442695
  %v772 = vpow.pop %v771
  %v773 = vmul.f32 %v770, 1.442695
  %v774 = vpow.pop %v773
  %v775 = vsel %vm457, %v772, 0.0
  %776 = vadd.xlane.f32.xlu0 %v775
  %v777 = vpop.xlane.xlu0 %776
  %v778 = vsel %vm461, %v774, 0.0
  %779 = vadd.xlane.f32.xlu0 %v778
  %v780 = vpop.xlane.xlu0 %779
  %v781 = vrcp.pop %v777
  %v782 = vrcp.pop %v780
  %v783 = vmul.f32 %v772, %v781
  %v784 = vmul.f32 %v774, %v782
  %785 = vrot.lane.b32.xlu0 %v410, 40
  %v786 = vpop.permute.xlu0 %785
  %787 = vrot.lane.b32.xlu0 %v413, 40
  %v788 = vpop.permute.xlu0 %787
  %v791 = vsel %vm457, %v783, 0
  %v794 = vsel %vm457, %v784, 0
  %v796 = vsel %vm492, %v788, 0
  %798 = vmatpush.msra.mxu0 0.0
  %799 = vmatpush.msra.mxu0 0.0
  %800 = vmatpush.msra.mxu0 0.0
  %801 = vmatpush.msra.mxu0 0.0
  %802 = vmatpush.msra.mxu0 0.0
  %803 = vmatpush.msra.mxu0 0.0
  %804 = vmatpush.msra.mxu0 0.0
  %805 = vmatpush.msra.mxu0 0.0
  %806 = vmatpush.msra.mxu0 0.0
  %807 = vmatpush.msra.mxu0 0.0
  %808 = vmatpush.msra.mxu0 0.0
  %809 = vmatpush.msra.mxu0 0.0
  %810 = vmatpush.msra.mxu0 0.0
  %811 = vmatpush.msra.mxu0 0.0
  %812 = vmatpush.msra.mxu0 %v796
  %813 = vmatpush.msra.mxu0 %v786
  %814 = vmatmul.f32.gmra.mxu0 %v791
  %v815 = vpop.f32.mrf.mxu0
  %v816 = vadd.f32 0.0, %v815
  %817 = vmatmul.f32.gmra.mxu0 %v794
  %v818 = vpop.f32.mrf.mxu0
  %v819 = vadd.f32 0.0, %v818
  %820 = vdwg.mxu0
  %823 = vrot.lane.b32.xlu0 %v614, 8
  %v824 = vpop.permute.xlu0 %823
  %825 = vrot.lane.b32.xlu0 %v617, 8
  %v826 = vpop.permute.xlu0 %825
  %831 = vrot.lane.b32.xlu0 %v715, 16
  %v832 = vpop.permute.xlu0 %831
  %833 = vrot.lane.b32.xlu0 %v718, 16
  %v834 = vpop.permute.xlu0 %833
  %839 = vrot.lane.b32.xlu0 %v816, 24
  %v840 = vpop.permute.xlu0 %839
  %841 = vrot.lane.b32.xlu0 %v819, 24
  %v842 = vpop.permute.xlu0 %841
  %v845 = vsel %vm421, %v513, %v824
  %v846 = vsel %vm421, %v516, %v826
  %vm847 = vcmask 130048
  %v848 = vsel %vm847, %v845, %v832
  %v849 = vsel %vm847, %v846, %v834
  %vm850 = vcmask 195584
  %v851 = vsel %vm850, %v848, %v840
  %v852 = vsel %vm850, %v849, %v842
  %v853 = vld [vmem:[%s10] sm:$0xff]
  %v854 = vld [vmem:[%s10 + $0x8] sm:$0xff]
  %v855 = vld [vmem:[%s10 + $0x10] sm:$0xff]
  %v856 = vld [vmem:[%s10 + $0x18] sm:$0xff]
  %v857 = vld [vmem:[%s11] sm:$0x1]
  %v858 = vperm.slane %v857, 0
  %v860 = vsel %vm321, %v851, 0
  %v863 = vsel %vm321, %v852, 0
  %865 = vmatpush.msra.mxu0 0.0
  %866 = vmatpush.msra.mxu0 0.0
  %867 = vmatpush.msra.mxu0 0.0
  %868 = vmatpush.msra.mxu0 0.0
  %869 = vmatpush.msra.mxu0 0.0
  %870 = vmatpush.msra.mxu0 0.0
  %871 = vmatpush.msra.mxu0 0.0
  %872 = vmatpush.msra.mxu0 0.0
  %873 = vmatpush.msra.mxu0 0.0
  %874 = vmatpush.msra.mxu0 0.0
  %875 = vmatpush.msra.mxu0 0.0
  %876 = vmatpush.msra.mxu0 0.0
  %877 = vmatpush.msra.mxu0 %v856
  %878 = vmatpush.msra.mxu0 %v855
  %879 = vmatpush.msra.mxu0 %v854
  %880 = vmatpush.msra.mxu0 %v853
  %881 = vmatmul.f32.gmra.mxu0 %v860
  %v882 = vpop.f32.mrf.mxu0
  %v883 = vadd.f32 %v858, %v882
  %884 = vmatmul.f32.gmra.mxu0 %v863
  %v885 = vpop.f32.mrf.mxu0
  %v886 = vadd.f32 %v858, %v885
  %887 = vdwg.mxu0
  %v888 = vadd.f32 %v315, %v883
  %v889 = vadd.f32 %v316, %v886
  %v890 = vld [vmem:[%s12] sm:$0x1]
  %v891 = vld [vmem:[%s13] sm:$0x1]
  %v892 = vsel %vm321, %v888, 0.0
  %893 = vadd.xlane.f32.xlu0 %v892
  %v894 = vpop.xlane.xlu0 %893
  %v895 = vsel %vm325, %v889, 0.0
  %896 = vadd.xlane.f32.xlu0 %v895
  %v897 = vpop.xlane.xlu0 %896
  %v898 = vmul.f32 %v894, %v335
  %v899 = vmul.f32 %v897, %v335
  %v900 = vsub.f32 %v888, %v898
  %v901 = vsub.f32 %v889, %v899
  %v902 = vmul.f32 %v900, %v900
  %v903 = vmul.f32 %v901, %v901
  %v904 = vsel %vm321, %v902, 0.0
  %905 = vadd.xlane.f32.xlu0 %v904
  %v906 = vpop.xlane.xlu0 %905
  %v907 = vsel %vm325, %v903, 0.0
  %908 = vadd.xlane.f32.xlu0 %v907
  %v909 = vpop.xlane.xlu0 %908
  %v910 = vmul.f32 %v906, %v335
  %v911 = vmul.f32 %v909, %v335
  %v912 = vadd.f32 %v910, 1e-06
  %v913 = vadd.f32 %v911, 1e-06
  %v914 = vrsqrt.pop %v912
  %v915 = vmul.f32 %v914, %v912
  %v916 = vmul.f32 %v915, %v914
  %v917 = vmul.f32 0.5, %v916
  %v918 = vsub.f32 1.5, %v917
  %v919 = vmul.f32 %v914, %v918
  %vm920 = vweird.f32 %v912
  %vm921 = vweird.f32 %v914
  %vm922 = vmor %vm920, %vm921
  %v923 = vsel %vm922, %v914, %v919
  %v924 = vrsqrt.pop %v913
  %v925 = vmul.f32 %v924, %v913
  %v926 = vmul.f32 %v925, %v924
  %v927 = vmul.f32 0.5, %v926
  %v928 = vsub.f32 1.5, %v927
  %v929 = vmul.f32 %v924, %v928
  %vm930 = vweird.f32 %v913
  %vm931 = vweird.f32 %v924
  %vm932 = vmor %vm930, %vm931
  %v933 = vsel %vm932, %v924, %v929
  %v934 = vmul.f32 %v900, %v923
  %v935 = vmul.f32 %v901, %v933
  %v936 = vperm.slane %v890, 0
  %v937 = vmul.f32 %v934, %v936
  %v938 = vmul.f32 %v935, %v936
  %v939 = vperm.slane %v891, 0
  %v940 = vadd.f32 %v937, %v939
  %v941 = vadd.f32 %v938, %v939
  %v942 = vld [vmem:[%s14] sm:$0xff]
  %v943 = vld [vmem:[%s14 + $0x8] sm:$0xff]
  %v944 = vld [vmem:[%s14 + $0x10] sm:$0xff]
  %v945 = vld [vmem:[%s14 + $0x18] sm:$0xff]
  %v946 = vld [vmem:[%s15] sm:$0x1]
  %v947 = vperm.slane %v946, 0
  %v949 = vsel %vm321, %v940, 0
  %v952 = vsel %vm321, %v941, 0
  %954 = vmatpush.msra.mxu0 0.0
  %955 = vmatpush.msra.mxu0 0.0
  %956 = vmatpush.msra.mxu0 0.0
  %957 = vmatpush.msra.mxu0 0.0
  %958 = vmatpush.msra.mxu0 0.0
  %959 = vmatpush.msra.mxu0 0.0
  %960 = vmatpush.msra.mxu0 0.0
  %961 = vmatpush.msra.mxu0 0.0
  %962 = vmatpush.msra.mxu0 0.0
  %963 = vmatpush.msra.mxu0 0.0
  %964 = vmatpush.msra.mxu0 0.0
  %965 = vmatpush.msra.mxu0 0.0
  %966 = vmatpush.msra.mxu0 %v945
  %967 = vmatpush.msra.mxu0 %v944
  %968 = vmatpush.msra.mxu0 %v943
  %969 = vmatpush.msra.mxu0 %v942
  %970 = vmatmul.f32.gmra.mxu0 %v949
  %v971 = vpop.f32.mrf.mxu0
  %v972 = vadd.f32 %v947, %v971
  %973 = vmatmul.f32.gmra.mxu0 %v952
  %v974 = vpop.f32.mrf.mxu0
  %v975 = vadd.f32 %v947, %v974
  %976 = vdwg.mxu0
  %v977 = vmul.f32 %v972, 0.5
  %v978 = vmul.f32 %v975, 0.5
  %v979 = vmul.f32 %v972, 0.70710677
  %v980 = vmul.f32 %v975, 0.70710677
  %v981 = vmul.f32 %v979, %v979
  %v982 = vmin.f32 16.0, %v981
  %v983 = vmul.f32 %v982, 2.1237322e-06
  %v984 = vadd.f32 %v983, 0.00028619796
  %v985 = vmul.f32 %v982, %v984
  %v986 = vadd.f32 %v985, 0.0036580483
  %v987 = vmul.f32 %v982, %v986
  %v988 = vadd.f32 %v987, 0.05243302
  %v989 = vmul.f32 %v982, %v988
  %v990 = vadd.f32 %v989, 0.18741608
  %v991 = vmul.f32 %v982, %v990
  %v992 = vadd.f32 %v991, 1.1283791
  %v993 = vmul.f32 %v979, %v992
  %v994 = vmul.f32 %v982, 3.8918573e-05
  %v995 = vadd.f32 %v994, 0.001143296
  %v996 = vmul.f32 %v982, %v995
  %v997 = vadd.f32 %v996, 0.014752088
  %v998 = vmul.f32 %v982, %v997
  %v999 = vadd.f32 %v998, 0.112945676
  %v1000 = vmul.f32 %v982, %v999
  %v1001 = vadd.f32 %v1000, 0.4994258
  %v1002 = vmul.f32 %v982, %v1001
  %v1003 = vadd.f32 %v1002, 1.0
  %v1004 = vrcp.pop %v1003
  %v1005 = vmul.f32 %v1003, %v1004
  %v1006 = vsub.f32 1.0, %v1005
  %v1007 = vmul.f32 %v1004, %v1006
  %v1008 = vadd.f32 %v1004, %v1007
  %vm1009 = vweird.f32 %v1003
  %vm1010 = vweird.f32 %v1004
  %vm1011 = vmor %vm1009, %vm1010
  %v1012 = vsel %vm1011, %v1004, %v1008
  %v1013 = vand.u32 2147483647, %v1003
  %vm1014 = vcmp.eq.f32.partialorder %v1013, 8.507059e+37
  %v1015 = vand.u32 %v1003, 2147483648
  %v1016 = vor.u32 1.1754944e-38, %v1015
  %v1017 = vsel %vm1014, %v1016, %v1012
  %v1018 = vmul.f32 %v993, %v1017
  %v1019 = vmin.f32 %v1018, 1.0
  %v1020 = vmax.f32 %v1019, -1.0
  %v1021 = vmul.f32 %v980, %v980
  %v1022 = vmin.f32 16.0, %v1021
  %v1023 = vmul.f32 %v1022, 2.1237322e-06
  %v1024 = vadd.f32 %v1023, 0.00028619796
  %v1025 = vmul.f32 %v1022, %v1024
  %v1026 = vadd.f32 %v1025, 0.0036580483
  %v1027 = vmul.f32 %v1022, %v1026
  %v1028 = vadd.f32 %v1027, 0.05243302
  %v1029 = vmul.f32 %v1022, %v1028
  %v1030 = vadd.f32 %v1029, 0.18741608
  %v1031 = vmul.f32 %v1022, %v1030
  %v1032 = vadd.f32 %v1031, 1.1283791
  %v1033 = vmul.f32 %v980, %v1032
  %v1034 = vmul.f32 %v1022, 3.8918573e-05
  %v1035 = vadd.f32 %v1034, 0.001143296
  %v1036 = vmul.f32 %v1022, %v1035
  %v1037 = vadd.f32 %v1036, 0.014752088
  %v1038 = vmul.f32 %v1022, %v1037
  %v1039 = vadd.f32 %v1038, 0.112945676
  %v1040 = vmul.f32 %v1022, %v1039
  %v1041 = vadd.f32 %v1040, 0.4994258
  %v1042 = vmul.f32 %v1022, %v1041
  %v1043 = vadd.f32 %v1042, 1.0
  %v1044 = vrcp.pop %v1043
  %v1045 = vmul.f32 %v1043, %v1044
  %v1046 = vsub.f32 1.0, %v1045
  %v1047 = vmul.f32 %v1044, %v1046
  %v1048 = vadd.f32 %v1044, %v1047
  %vm1049 = vweird.f32 %v1043
  %vm1050 = vweird.f32 %v1044
  %vm1051 = vmor %vm1049, %vm1050
  %v1052 = vsel %vm1051, %v1044, %v1048
  %v1053 = vand.u32 2147483647, %v1043
  %vm1054 = vcmp.eq.f32.partialorder %v1053, 8.507059e+37
  %v1055 = vand.u32 %v1043, 2147483648
  %v1056 = vor.u32 1.1754944e-38, %v1055
  %v1057 = vsel %vm1054, %v1056, %v1052
  %v1058 = vmul.f32 %v1033, %v1057
  %v1059 = vmin.f32 %v1058, 1.0
  %v1060 = vmax.f32 %v1059, -1.0
  %v1061 = vadd.f32 %v1020, 1.0
  %v1062 = vadd.f32 %v1060, 1.0
  %v1063 = vmul.f32 %v977, %v1061
  %v1064 = vmul.f32 %v978, %v1062
  %v1065 = vld [vmem:[%s16] sm:$0xff]
  %v1066 = vld [vmem:[%s16 + $0x8] sm:$0xff]
  %v1067 = vld [vmem:[%s16 + $0x10] sm:$0xff]
  %v1068 = vld [vmem:[%s16 + $0x18] sm:$0xff]
  %v1069 = vld [vmem:[%s16 + $0x20] sm:$0xff]
  %v1070 = vld [vmem:[%s16 + $0x28] sm:$0xff]
  %v1071 = vld [vmem:[%s16 + $0x30] sm:$0xff]
  %v1072 = vld [vmem:[%s16 + $0x38] sm:$0xff]
  %v1073 = vld [vmem:[%s17] sm:$0x1]
  %v1074 = vperm.slane %v1073, 0
  %vm1075 = vcmask 523264
  %v1077 = vsel %vm1075, %v1063, 0
  %v1080 = vsel %vm1075, %v1064, 0
  %1082 = vmatpush.msra.mxu0 0.0
  %1083 = vmatpush.msra.mxu0 0.0
  %1084 = vmatpush.msra.mxu0 0.0
  %1085 = vmatpush.msra.mxu0 0.0
  %1086 = vmatpush.msra.mxu0 0.0
  %1087 = vmatpush.msra.mxu0 0.0
  %1088 = vmatpush.msra.mxu0 0.0
  %1089 = vmatpush.msra.mxu0 0.0
  %1090 = vmatpush.msra.mxu0 %v1072
  %1091 = vmatpush.msra.mxu0 %v1071
  %1092 = vmatpush.msra.mxu0 %v1070
  %1093 = vmatpush.msra.mxu0 %v1069
  %1094 = vmatpush.msra.mxu0 %v1068
  %1095 = vmatpush.msra.mxu0 %v1067
  %1096 = vmatpush.msra.mxu0 %v1066
  %1097 = vmatpush.msra.mxu0 %v1065
  %1098 = vmatmul.f32.gmra.mxu0 %v1077
  %v1099 = vpop.f32.mrf.mxu0
  %v1100 = vadd.f32 %v1074, %v1099
  %1101 = vmatmul.f32.gmra.mxu0 %v1080
  %v1102 = vpop.f32.mrf.mxu0
  %v1103 = vadd.f32 %v1074, %v1102
  %1104 = vdwg.mxu0
  %v1105 = vadd.f32 %v888, %v1100
  %v1106 = vadd.f32 %v889, %v1103
  %v1107 = vld [vmem:[%s6 + $0x1] sm:$0x1]
  %v1108 = vld [vmem:[%s7 + $0x1] sm:$0x1]
  %v1109 = vsel %vm321, %v1105, 0.0
  %1110 = vadd.xlane.f32.xlu0 %v1109
  %v1111 = vpop.xlane.xlu0 %1110
  %v1112 = vsel %vm325, %v1106, 0.0
  %1113 = vadd.xlane.f32.xlu0 %v1112
  %v1114 = vpop.xlane.xlu0 %1113
  %v1115 = vmul.f32 %v1111, %v335
  %v1116 = vmul.f32 %v1114, %v335
  %v1117 = vsub.f32 %v1105, %v1115
  %v1118 = vsub.f32 %v1106, %v1116
  %v1119 = vmul.f32 %v1117, %v1117
  %v1120 = vmul.f32 %v1118, %v1118
  %v1121 = vsel %vm321, %v1119, 0.0
  %1122 = vadd.xlane.f32.xlu0 %v1121
  %v1123 = vpop.xlane.xlu0 %1122
  %v1124 = vsel %vm325, %v1120, 0.0
  %1125 = vadd.xlane.f32.xlu0 %v1124
  %v1126 = vpop.xlane.xlu0 %1125
  %v1127 = vmul.f32 %v1123, %v335
  %v1128 = vmul.f32 %v1126, %v335
  %v1129 = vadd.f32 %v1127, 1e-06
  %v1130 = vadd.f32 %v1128, 1e-06
  %v1131 = vrsqrt.pop %v1129
  %v1132 = vmul.f32 %v1131, %v1129
  %v1133 = vmul.f32 %v1132, %v1131
  %v1134 = vmul.f32 0.5, %v1133
  %v1135 = vsub.f32 1.5, %v1134
  %v1136 = vmul.f32 %v1131, %v1135
  %vm1137 = vweird.f32 %v1129
  %vm1138 = vweird.f32 %v1131
  %vm1139 = vmor %vm1137, %vm1138
  %v1140 = vsel %vm1139, %v1131, %v1136
  %v1141 = vrsqrt.pop %v1130
  %v1142 = vmul.f32 %v1141, %v1130
  %v1143 = vmul.f32 %v1142, %v1141
  %v1144 = vmul.f32 0.5, %v1143
  %v1145 = vsub.f32 1.5, %v1144
  %v1146 = vmul.f32 %v1141, %v1145
  %vm1147 = vweird.f32 %v1130
  %vm1148 = vweird.f32 %v1141
  %vm1149 = vmor %vm1147, %vm1148
  %v1150 = vsel %vm1149, %v1141, %v1146
  %v1151 = vmul.f32 %v1117, %v1140
  %v1152 = vmul.f32 %v1118, %v1150
  %v1153 = vperm.slane %v1107, 0
  %v1154 = vmul.f32 %v1151, %v1153
  %v1155 = vmul.f32 %v1152, %v1153
  %v1156 = vperm.slane %v1108, 0
  %v1157 = vadd.f32 %v1154, %v1156
  %v1158 = vadd.f32 %v1155, %v1156
  %s1159 = scalar_lea.vmem %s8, 32
  %v1160 = vld [vmem:[%s1159] sm:$0xff]
  %v1161 = vld [vmem:[%s1159 + $0x8] sm:$0xff]
  %v1162 = vld [vmem:[%s1159 + $0x10] sm:$0xff]
  %v1163 = vld [vmem:[%s1159 + $0x18] sm:$0xff]
  %v1164 = vld [vmem:[%s9 + $0x1] sm:$0x1]
  %v1165 = vperm.slane %v1164, 0
  %v1167 = vsel %vm321, %v1157, 0
  %v1170 = vsel %vm321, %v1158, 0
  %1172 = vmatpush.msra.mxu0 0.0
  %1173 = vmatpush.msra.mxu0 0.0
  %1174 = vmatpush.msra.mxu0 0.0
  %1175 = vmatpush.msra.mxu0 0.0
  %1176 = vmatpush.msra.mxu0 0.0
  %1177 = vmatpush.msra.mxu0 0.0
  %1178 = vmatpush.msra.mxu0 0.0
  %1179 = vmatpush.msra.mxu0 0.0
  %1180 = vmatpush.msra.mxu0 0.0
  %1181 = vmatpush.msra.mxu0 0.0
  %1182 = vmatpush.msra.mxu0 0.0
  %1183 = vmatpush.msra.mxu0 0.0
  %1184 = vmatpush.msra.mxu0 %v1163
  %1185 = vmatpush.msra.mxu0 %v1162
  %1186 = vmatpush.msra.mxu0 %v1161
  %1187 = vmatpush.msra.mxu0 %v1160
  %1188 = vmatmul.f32.gmra.mxu0 %v1167
  %v1189 = vpop.f32.mrf.mxu0
  %v1190 = vadd.f32 %v1165, %v1189
  %1191 = vmatmul.f32.gmra.mxu0 %v1170
  %v1192 = vpop.f32.mrf.mxu0
  %v1193 = vadd.f32 %v1165, %v1192
  %1194 = vdwg.mxu0
  %1197 = vrot.lane.b32.xlu0 %v1190, 96
  %v1198 = vpop.permute.xlu0 %1197
  %1199 = vrot.lane.b32.xlu0 %v1193, 96
  %v1200 = vpop.permute.xlu0 %1199
  %v1201 = vsel %vm421, %v1190, 0
  %v1203 = vsel %vm421, %v1193, 0
  %v1205 = vsel %vm421, %v1198, 0
  %v1207 = vsel %vm421, %v1200, 0
  %1209 = vmatpush.xpose.msra.mxu0 0.0
  %1210 = vmatpush.xpose.msra.mxu0 0.0
  %1211 = vmatpush.xpose.msra.mxu0 0.0
  %1212 = vmatpush.xpose.msra.mxu0 0.0
  %1213 = vmatpush.xpose.msra.mxu0 0.0
  %1214 = vmatpush.xpose.msra.mxu0 0.0
  %1215 = vmatpush.xpose.msra.mxu0 0.0
  %1216 = vmatpush.xpose.msra.mxu0 0.0
  %1217 = vmatpush.xpose.msra.mxu0 0.0
  %1218 = vmatpush.xpose.msra.mxu0 0.0
  %1219 = vmatpush.xpose.msra.mxu0 0.0
  %1220 = vmatpush.xpose.msra.mxu0 0.0
  %1221 = vmatpush.xpose.msra.mxu0 0.0
  %1222 = vmatpush.xpose.msra.mxu0 0.0
  %1223 = vmatpush.xpose.msra.mxu0 %v1207
  %1224 = vmatpush.xpose.msra.mxu0 %v1205
  %1225 = vmatmul.f32.gmra.mxu0 %v1201
  %v1226 = vpop.f32.mrf.mxu0
  %v1227 = vadd.f32 0.0, %v1226
  %1228 = vmatmul.f32.gmra.mxu0 %v1203
  %v1229 = vpop.f32.mrf.mxu0
  %v1230 = vadd.f32 0.0, %v1229
  %1231 = vdwg.mxu0
  %v1232 = vmul.f32 %v1227, 0.35355338
  %v1233 = vmul.f32 %v1230, 0.35355338
  %v1234 = vadd.f32 %v1232, %v317
  %v1235 = vadd.f32 %v1233, %v318
  %v1236 = vsel %vm457, %v1234, -inf
  %1237 = vmax.xlane.f32.xlu0 %v1236
  %v1238 = vpop.xlane.xlu0 %1237
  %v1239 = vsel %vm461, %v1235, -inf
  %1240 = vmax.xlane.f32.xlu0 %v1239
  %v1241 = vpop.xlane.xlu0 %1240
  %v1242 = vsub.f32 %v1234, %v1238
  %v1243 = vsub.f32 %v1235, %v1241
  %v1244 = vmul.f32 %v1242, 1.442695
  %v1245 = vpow.pop %v1244
  %v1246 = vmul.f32 %v1243, 1.442695
  %v1247 = vpow.pop %v1246
  %v1248 = vsel %vm457, %v1245, 0.0
  %1249 = vadd.xlane.f32.xlu0 %v1248
  %v1250 = vpop.xlane.xlu0 %1249
  %v1251 = vsel %vm461, %v1247, 0.0
  %1252 = vadd.xlane.f32.xlu0 %v1251
  %v1253 = vpop.xlane.xlu0 %1252
  %v1254 = vrcp.pop %v1250
  %v1255 = vrcp.pop %v1253
  %v1256 = vmul.f32 %v1245, %v1254
  %v1257 = vmul.f32 %v1247, %v1255
  %1258 = vrot.lane.b32.xlu0 %v1190, 64
  %v1259 = vpop.permute.xlu0 %1258
  %1260 = vrot.lane.b32.xlu0 %v1193, 64
  %v1261 = vpop.permute.xlu0 %1260
  %v1264 = vsel %vm457, %v1256, 0
  %v1267 = vsel %vm457, %v1257, 0
  %v1269 = vsel %vm492, %v1261, 0
  %1271 = vmatpush.msra.mxu0 0.0
  %1272 = vmatpush.msra.mxu0 0.0
  %1273 = vmatpush.msra.mxu0 0.0
  %1274 = vmatpush.msra.mxu0 0.0
  %1275 = vmatpush.msra.mxu0 0.0
  %1276 = vmatpush.msra.mxu0 0.0
  %1277 = vmatpush.msra.mxu0 0.0
  %1278 = vmatpush.msra.mxu0 0.0
  %1279 = vmatpush.msra.mxu0 0.0
  %1280 = vmatpush.msra.mxu0 0.0
  %1281 = vmatpush.msra.mxu0 0.0
  %1282 = vmatpush.msra.mxu0 0.0
  %1283 = vmatpush.msra.mxu0 0.0
  %1284 = vmatpush.msra.mxu0 0.0
  %1285 = vmatpush.msra.mxu0 %v1269
  %1286 = vmatpush.msra.mxu0 %v1259
  %1287 = vmatmul.f32.gmra.mxu0 %v1264
  %v1288 = vpop.f32.mrf.mxu0
  %v1289 = vadd.f32 0.0, %v1288
  %1290 = vmatmul.f32.gmra.mxu0 %v1267
  %v1291 = vpop.f32.mrf.mxu0
  %v1292 = vadd.f32 0.0, %v1291
  %1293 = vdwg.mxu0
  %1294 = vrot.lane.b32.xlu0 %v1190, 120
  %v1295 = vpop.permute.xlu0 %1294
  %1296 = vrot.lane.b32.xlu0 %v1193, 120
  %v1297 = vpop.permute.xlu0 %1296
  %1298 = vrot.lane.b32.xlu0 %v1190, 88
  %v1299 = vpop.permute.xlu0 %1298
  %1300 = vrot.lane.b32.xlu0 %v1193, 88
  %v1301 = vpop.permute.xlu0 %1300
  %v1302 = vsel %vm421, %v1295, 0
  %v1304 = vsel %vm421, %v1297, 0
  %v1306 = vsel %vm421, %v1299, 0
  %v1308 = vsel %vm421, %v1301, 0
  %1310 = vmatpush.xpose.msra.mxu0 0.0
  %1311 = vmatpush.xpose.msra.mxu0 0.0
  %1312 = vmatpush.xpose.msra.mxu0 0.0
  %1313 = vmatpush.xpose.msra.mxu0 0.0
  %1314 = vmatpush.xpose.msra.mxu0 0.0
  %1315 = vmatpush.xpose.msra.mxu0 0.0
  %1316 = vmatpush.xpose.msra.mxu0 0.0
  %1317 = vmatpush.xpose.msra.mxu0 0.0
  %1318 = vmatpush.xpose.msra.mxu0 0.0
  %1319 = vmatpush.xpose.msra.mxu0 0.0
  %1320 = vmatpush.xpose.msra.mxu0 0.0
  %1321 = vmatpush.xpose.msra.mxu0 0.0
  %1322 = vmatpush.xpose.msra.mxu0 0.0
  %1323 = vmatpush.xpose.msra.mxu0 0.0
  %1324 = vmatpush.xpose.msra.mxu0 %v1308
  %1325 = vmatpush.xpose.msra.mxu0 %v1306
  %1326 = vmatmul.f32.gmra.mxu0 %v1302
  %v1327 = vpop.f32.mrf.mxu0
  %v1328 = vadd.f32 0.0, %v1327
  %1329 = vmatmul.f32.gmra.mxu0 %v1304
  %v1330 = vpop.f32.mrf.mxu0
  %v1331 = vadd.f32 0.0, %v1330
  %1332 = vdwg.mxu0
  %v1333 = vmul.f32 %v1328, 0.35355338
  %v1334 = vmul.f32 %v1331, 0.35355338
  %v1335 = vadd.f32 %v1333, %v317
  %v1336 = vadd.f32 %v1334, %v318
  %v1337 = vsel %vm457, %v1335, -inf
  %1338 = vmax.xlane.f32.xlu0 %v1337
  %v1339 = vpop.xlane.xlu0 %1338
  %v1340 = vsel %vm461, %v1336, -inf
  %1341 = vmax.xlane.f32.xlu0 %v1340
  %v1342 = vpop.xlane.xlu0 %1341
  %v1343 = vsub.f32 %v1335, %v1339
  %v1344 = vsub.f32 %v1336, %v1342
  %v1345 = vmul.f32 %v1343, 1.442695
  %v1346 = vpow.pop %v1345
  %v1347 = vmul.f32 %v1344, 1.442695
  %v1348 = vpow.pop %v1347
  %v1349 = vsel %vm457, %v1346, 0.0
  %1350 = vadd.xlane.f32.xlu0 %v1349
  %v1351 = vpop.xlane.xlu0 %1350
  %v1352 = vsel %vm461, %v1348, 0.0
  %1353 = vadd.xlane.f32.xlu0 %v1352
  %v1354 = vpop.xlane.xlu0 %1353
  %v1355 = vrcp.pop %v1351
  %v1356 = vrcp.pop %v1354
  %v1357 = vmul.f32 %v1346, %v1355
  %v1358 = vmul.f32 %v1348, %v1356
  %1359 = vrot.lane.b32.xlu0 %v1190, 56
  %v1360 = vpop.permute.xlu0 %1359
  %1361 = vrot.lane.b32.xlu0 %v1193, 56
  %v1362 = vpop.permute.xlu0 %1361
  %v1365 = vsel %vm457, %v1357, 0
  %v1368 = vsel %vm457, %v1358, 0
  %v1370 = vsel %vm492, %v1362, 0
  %1372 = vmatpush.msra.mxu0 0.0
  %1373 = vmatpush.msra.mxu0 0.0
  %1374 = vmatpush.msra.mxu0 0.0
  %1375 = vmatpush.msra.mxu0 0.0
  %1376 = vmatpush.msra.mxu0 0.0
  %1377 = vmatpush.msra.mxu0 0.0
  %1378 = vmatpush.msra.mxu0 0.0
  %1379 = vmatpush.msra.mxu0 0.0
  %1380 = vmatpush.msra.mxu0 0.0
  %1381 = vmatpush.msra.mxu0 0.0
  %1382 = vmatpush.msra.mxu0 0.0
  %1383 = vmatpush.msra.mxu0 0.0
  %1384 = vmatpush.msra.mxu0 0.0
  %1385 = vmatpush.msra.mxu0 0.0
  %1386 = vmatpush.msra.mxu0 %v1370
  %1387 = vmatpush.msra.mxu0 %v1360
  %1388 = vmatmul.f32.gmra.mxu0 %v1365
  %v1389 = vpop.f32.mrf.mxu0
  %v1390 = vadd.f32 0.0, %v1389
  %1391 = vmatmul.f32.gmra.mxu0 %v1368
  %v1392 = vpop.f32.mrf.mxu0
  %v1393 = vadd.f32 0.0, %v1392
  %1394 = vdwg.mxu0
  %1395 = vrot.lane.b32.xlu0 %v1190, 112
  %v1396 = vpop.permute.xlu0 %1395
  %1397 = vrot.lane.b32.xlu0 %v1193, 112
  %v1398 = vpop.permute.xlu0 %1397
  %1399 = vrot.lane.b32.xlu0 %v1190, 80
  %v1400 = vpop.permute.xlu0 %1399
  %1401 = vrot.lane.b32.xlu0 %v1193, 80
  %v1402 = vpop.permute.xlu0 %1401
  %v1403 = vsel %vm421, %v1396, 0
  %v1405 = vsel %vm421, %v1398, 0
  %v1407 = vsel %vm421, %v1400, 0
  %v1409 = vsel %vm421, %v1402, 0
  %1411 = vmatpush.xpose.msra.mxu0 0.0
  %1412 = vmatpush.xpose.msra.mxu0 0.0
  %1413 = vmatpush.xpose.msra.mxu0 0.0
  %1414 = vmatpush.xpose.msra.mxu0 0.0
  %1415 = vmatpush.xpose.msra.mxu0 0.0
  %1416 = vmatpush.xpose.msra.mxu0 0.0
  %1417 = vmatpush.xpose.msra.mxu0 0.0
  %1418 = vmatpush.xpose.msra.mxu0 0.0
  %1419 = vmatpush.xpose.msra.mxu0 0.0
  %1420 = vmatpush.xpose.msra.mxu0 0.0
  %1421 = vmatpush.xpose.msra.mxu0 0.0
  %1422 = vmatpush.xpose.msra.mxu0 0.0
  %1423 = vmatpush.xpose.msra.mxu0 0.0
  %1424 = vmatpush.xpose.msra.mxu0 0.0
  %1425 = vmatpush.xpose.msra.mxu0 %v1409
  %1426 = vmatpush.xpose.msra.mxu0 %v1407
  %1427 = vmatmul.f32.gmra.mxu0 %v1403
  %v1428 = vpop.f32.mrf.mxu0
  %v1429 = vadd.f32 0.0, %v1428
  %1430 = vmatmul.f32.gmra.mxu0 %v1405
  %v1431 = vpop.f32.mrf.mxu0
  %v1432 = vadd.f32 0.0, %v1431
  %1433 = vdwg.mxu0
  %v1434 = vmul.f32 %v1429, 0.35355338
  %v1435 = vmul.f32 %v1432, 0.35355338
  %v1436 = vadd.f32 %v1434, %v317
  %v1437 = vadd.f32 %v1435, %v318
  %v1438 = vsel %vm457, %v1436, -inf
  %1439 = vmax.xlane.f32.xlu0 %v1438
  %v1440 = vpop.xlane.xlu0 %1439
  %v1441 = vsel %vm461, %v1437, -inf
  %1442 = vmax.xlane.f32.xlu0 %v1441
  %v1443 = vpop.xlane.xlu0 %1442
  %v1444 = vsub.f32 %v1436, %v1440
  %v1445 = vsub.f32 %v1437, %v1443
  %v1446 = vmul.f32 %v1444, 1.442695
  %v1447 = vpow.pop %v1446
  %v1448 = vmul.f32 %v1445, 1.442695
  %v1449 = vpow.pop %v1448
  %v1450 = vsel %vm457, %v1447, 0.0
  %1451 = vadd.xlane.f32.xlu0 %v1450
  %v1452 = vpop.xlane.xlu0 %1451
  %v1453 = vsel %vm461, %v1449, 0.0
  %1454 = vadd.xlane.f32.xlu0 %v1453
  %v1455 = vpop.xlane.xlu0 %1454
  %v1456 = vrcp.pop %v1452
  %v1457 = vrcp.pop %v1455
  %v1458 = vmul.f32 %v1447, %v1456
  %v1459 = vmul.f32 %v1449, %v1457
  %1460 = vrot.lane.b32.xlu0 %v1190, 48
  %v1461 = vpop.permute.xlu0 %1460
  %1462 = vrot.lane.b32.xlu0 %v1193, 48
  %v1463 = vpop.permute.xlu0 %1462
  %v1466 = vsel %vm457, %v1458, 0
  %v1469 = vsel %vm457, %v1459, 0
  %v1471 = vsel %vm492, %v1463, 0
  %1473 = vmatpush.msra.mxu0 0.0
  %1474 = vmatpush.msra.mxu0 0.0
  %1475 = vmatpush.msra.mxu0 0.0
  %1476 = vmatpush.msra.mxu0 0.0
  %1477 = vmatpush.msra.mxu0 0.0
  %1478 = vmatpush.msra.mxu0 0.0
  %1479 = vmatpush.msra.mxu0 0.0
  %1480 = vmatpush.msra.mxu0 0.0
  %1481 = vmatpush.msra.mxu0 0.0
  %1482 = vmatpush.msra.mxu0 0.0
  %1483 = vmatpush.msra.mxu0 0.0
  %1484 = vmatpush.msra.mxu0 0.0
  %1485 = vmatpush.msra.mxu0 0.0
  %1486 = vmatpush.msra.mxu0 0.0
  %1487 = vmatpush.msra.mxu0 %v1471
  %1488 = vmatpush.msra.mxu0 %v1461
  %1489 = vmatmul.f32.gmra.mxu0 %v1466
  %v1490 = vpop.f32.mrf.mxu0
  %v1491 = vadd.f32 0.0, %v1490
  %1492 = vmatmul.f32.gmra.mxu0 %v1469
  %v1493 = vpop.f32.mrf.mxu0
  %v1494 = vadd.f32 0.0, %v1493
  %1495 = vdwg.mxu0
  %1496 = vrot.lane.b32.xlu0 %v1190, 104
  %v1497 = vpop.permute.xlu0 %1496
  %1498 = vrot.lane.b32.xlu0 %v1193, 104
  %v1499 = vpop.permute.xlu0 %1498
  %1500 = vrot.lane.b32.xlu0 %v1190, 72
  %v1501 = vpop.permute.xlu0 %1500
  %1502 = vrot.lane.b32.xlu0 %v1193, 72
  %v1503 = vpop.permute.xlu0 %1502
  %v1504 = vsel %vm421, %v1497, 0
  %v1506 = vsel %vm421, %v1499, 0
  %v1508 = vsel %vm421, %v1501, 0
  %v1510 = vsel %vm421, %v1503, 0
  %1512 = vmatpush.xpose.msra.mxu0 0.0
  %1513 = vmatpush.xpose.msra.mxu0 0.0
  %1514 = vmatpush.xpose.msra.mxu0 0.0
  %1515 = vmatpush.xpose.msra.mxu0 0.0
  %1516 = vmatpush.xpose.msra.mxu0 0.0
  %1517 = vmatpush.xpose.msra.mxu0 0.0
  %1518 = vmatpush.xpose.msra.mxu0 0.0
  %1519 = vmatpush.xpose.msra.mxu0 0.0
  %1520 = vmatpush.xpose.msra.mxu0 0.0
  %1521 = vmatpush.xpose.msra.mxu0 0.0
  %1522 = vmatpush.xpose.msra.mxu0 0.0
  %1523 = vmatpush.xpose.msra.mxu0 0.0
  %1524 = vmatpush.xpose.msra.mxu0 0.0
  %1525 = vmatpush.xpose.msra.mxu0 0.0
  %1526 = vmatpush.xpose.msra.mxu0 %v1510
  %1527 = vmatpush.xpose.msra.mxu0 %v1508
  %1528 = vmatmul.f32.gmra.mxu0 %v1504
  %v1529 = vpop.f32.mrf.mxu0
  %v1530 = vadd.f32 0.0, %v1529
  %1531 = vmatmul.f32.gmra.mxu0 %v1506
  %v1532 = vpop.f32.mrf.mxu0
  %v1533 = vadd.f32 0.0, %v1532
  %1534 = vdwg.mxu0
  %v1535 = vmul.f32 %v1530, 0.35355338
  %v1536 = vmul.f32 %v1533, 0.35355338
  %v1537 = vadd.f32 %v1535, %v317
  %v1538 = vadd.f32 %v1536, %v318
  %v1539 = vsel %vm457, %v1537, -inf
  %1540 = vmax.xlane.f32.xlu0 %v1539
  %v1541 = vpop.xlane.xlu0 %1540
  %v1542 = vsel %vm461, %v1538, -inf
  %1543 = vmax.xlane.f32.xlu0 %v1542
  %v1544 = vpop.xlane.xlu0 %1543
  %v1545 = vsub.f32 %v1537, %v1541
  %v1546 = vsub.f32 %v1538, %v1544
  %v1547 = vmul.f32 %v1545, 1.442695
  %v1548 = vpow.pop %v1547
  %v1549 = vmul.f32 %v1546, 1.442695
  %v1550 = vpow.pop %v1549
  %v1551 = vsel %vm457, %v1548, 0.0
  %1552 = vadd.xlane.f32.xlu0 %v1551
  %v1553 = vpop.xlane.xlu0 %1552
  %v1554 = vsel %vm461, %v1550, 0.0
  %1555 = vadd.xlane.f32.xlu0 %v1554
  %v1556 = vpop.xlane.xlu0 %1555
  %v1557 = vrcp.pop %v1553
  %v1558 = vrcp.pop %v1556
  %v1559 = vmul.f32 %v1548, %v1557
  %v1560 = vmul.f32 %v1550, %v1558
  %1561 = vrot.lane.b32.xlu0 %v1190, 40
  %v1562 = vpop.permute.xlu0 %1561
  %1563 = vrot.lane.b32.xlu0 %v1193, 40
  %v1564 = vpop.permute.xlu0 %1563
  %v1567 = vsel %vm457, %v1559, 0
  %v1570 = vsel %vm457, %v1560, 0
  %v1572 = vsel %vm492, %v1564, 0
  %1574 = vmatpush.msra.mxu0 0.0
  %1575 = vmatpush.msra.mxu0 0.0
  %1576 = vmatpush.msra.mxu0 0.0
  %1577 = vmatpush.msra.mxu0 0.0
  %1578 = vmatpush.msra.mxu0 0.0
  %1579 = vmatpush.msra.mxu0 0.0
  %1580 = vmatpush.msra.mxu0 0.0
  %1581 = vmatpush.msra.mxu0 0.0
  %1582 = vmatpush.msra.mxu0 0.0
  %1583 = vmatpush.msra.mxu0 0.0
  %1584 = vmatpush.msra.mxu0 0.0
  %1585 = vmatpush.msra.mxu0 0.0
  %1586 = vmatpush.msra.mxu0 0.0
  %1587 = vmatpush.msra.mxu0 0.0
  %1588 = vmatpush.msra.mxu0 %v1572
  %1589 = vmatpush.msra.mxu0 %v1562
  %1590 = vmatmul.f32.gmra.mxu0 %v1567
  %v1591 = vpop.f32.mrf.mxu0
  %v1592 = vadd.f32 0.0, %v1591
  %1593 = vmatmul.f32.gmra.mxu0 %v1570
  %v1594 = vpop.f32.mrf.mxu0
  %v1595 = vadd.f32 0.0, %v1594
  %1596 = vdwg.mxu0
  %1599 = vrot.lane.b32.xlu0 %v1390, 8
  %v1600 = vpop.permute.xlu0 %1599
  %1601 = vrot.lane.b32.xlu0 %v1393, 8
  %v1602 = vpop.permute.xlu0 %1601
  %1607 = vrot.lane.b32.xlu0 %v1491, 16
  %v1608 = vpop.permute.xlu0 %1607
  %1609 = vrot.lane.b32.xlu0 %v1494, 16
  %v1610 = vpop.permute.xlu0 %1609
  %1615 = vrot.lane.b32.xlu0 %v1592, 24
  %v1616 = vpop.permute.xlu0 %1615
  %1617 = vrot.lane.b32.xlu0 %v1595, 24
  %v1618 = vpop.permute.xlu0 %1617
  %v1621 = vsel %vm421, %v1289, %v1600
  %v1622 = vsel %vm421, %v1292, %v1602
  %v1623 = vsel %vm847, %v1621, %v1608
  %v1624 = vsel %vm847, %v1622, %v1610
  %v1625 = vsel %vm850, %v1623, %v1616
  %v1626 = vsel %vm850, %v1624, %v1618
  %s1627 = scalar_lea.vmem %s10, 32
  %v1628 = vld [vmem:[%s1627] sm:$0xff]
  %v1629 = vld [vmem:[%s1627 + $0x8] sm:$0xff]
  %v1630 = vld [vmem:[%s1627 + $0x10] sm:$0xff]
  %v1631 = vld [vmem:[%s1627 + $0x18] sm:$0xff]
  %v1632 = vld [vmem:[%s11 + $0x1] sm:$0x1]
  %v1633 = vperm.slane %v1632, 0
  %v1635 = vsel %vm321, %v1625, 0
  %v1638 = vsel %vm321, %v1626, 0
  %1640 = vmatpush.msra.mxu0 0.0
  %1641 = vmatpush.msra.mxu0 0.0
  %1642 = vmatpush.msra.mxu0 0.0
  %1643 = vmatpush.msra.mxu0 0.0
  %1644 = vmatpush.msra.mxu0 0.0
  %1645 = vmatpush.msra.mxu0 0.0
  %1646 = vmatpush.msra.mxu0 0.0
  %1647 = vmatpush.msra.mxu0 0.0
  %1648 = vmatpush.msra.mxu0 0.0
  %1649 = vmatpush.msra.mxu0 0.0
  %1650 = vmatpush.msra.mxu0 0.0
  %1651 = vmatpush.msra.mxu0 0.0
  %1652 = vmatpush.msra.mxu0 %v1631
  %1653 = vmatpush.msra.mxu0 %v1630
  %1654 = vmatpush.msra.mxu0 %v1629
  %1655 = vmatpush.msra.mxu0 %v1628
  %1656 = vmatmul.f32.gmra.mxu0 %v1635
  %v1657 = vpop.f32.mrf.mxu0
  %v1658 = vadd.f32 %v1633, %v1657
  %1659 = vmatmul.f32.gmra.mxu0 %v1638
  %v1660 = vpop.f32.mrf.mxu0
  %v1661 = vadd.f32 %v1633, %v1660
  %1662 = vdwg.mxu0
  %v1663 = vadd.f32 %v1105, %v1658
  %v1664 = vadd.f32 %v1106, %v1661
  %v1665 = vld [vmem:[%s12 + $0x1] sm:$0x1]
  %v1666 = vld [vmem:[%s13 + $0x1] sm:$0x1]
  %v1667 = vsel %vm321, %v1663, 0.0
  %1668 = vadd.xlane.f32.xlu0 %v1667
  %v1669 = vpop.xlane.xlu0 %1668
  %v1670 = vsel %vm325, %v1664, 0.0
  %1671 = vadd.xlane.f32.xlu0 %v1670
  %v1672 = vpop.xlane.xlu0 %1671
  %v1673 = vmul.f32 %v1669, %v335
  %v1674 = vmul.f32 %v1672, %v335
  %v1675 = vsub.f32 %v1663, %v1673
  %v1676 = vsub.f32 %v1664, %v1674
  %v1677 = vmul.f32 %v1675, %v1675
  %v1678 = vmul.f32 %v1676, %v1676
  %v1679 = vsel %vm321, %v1677, 0.0
  %1680 = vadd.xlane.f32.xlu0 %v1679
  %v1681 = vpop.xlane.xlu0 %1680
  %v1682 = vsel %vm325, %v1678, 0.0
  %1683 = vadd.xlane.f32.xlu0 %v1682
  %v1684 = vpop.xlane.xlu0 %1683
  %v1685 = vmul.f32 %v1681, %v335
  %v1686 = vmul.f32 %v1684, %v335
  %v1687 = vadd.f32 %v1685, 1e-06
  %v1688 = vadd.f32 %v1686, 1e-06
  %v1689 = vrsqrt.pop %v1687
  %v1690 = vmul.f32 %v1689, %v1687
  %v1691 = vmul.f32 %v1690, %v1689
  %v1692 = vmul.f32 0.5, %v1691
  %v1693 = vsub.f32 1.5, %v1692
  %v1694 = vmul.f32 %v1689, %v1693
  %vm1695 = vweird.f32 %v1687
  %vm1696 = vweird.f32 %v1689
  %vm1697 = vmor %vm1695, %vm1696
  %v1698 = vsel %vm1697, %v1689, %v1694
  %v1699 = vrsqrt.pop %v1688
  %v1700 = vmul.f32 %v1699, %v1688
  %v1701 = vmul.f32 %v1700, %v1699
  %v1702 = vmul.f32 0.5, %v1701
  %v1703 = vsub.f32 1.5, %v1702
  %v1704 = vmul.f32 %v1699, %v1703
  %vm1705 = vweird.f32 %v1688
  %vm1706 = vweird.f32 %v1699
  %vm1707 = vmor %vm1705, %vm1706
  %v1708 = vsel %vm1707, %v1699, %v1704
  %v1709 = vmul.f32 %v1675, %v1698
  %v1710 = vmul.f32 %v1676, %v1708
  %v1711 = vperm.slane %v1665, 0
  %v1712 = vmul.f32 %v1709, %v1711
  %v1713 = vmul.f32 %v1710, %v1711
  %v1714 = vperm.slane %v1666, 0
  %v1715 = vadd.f32 %v1712, %v1714
  %v1716 = vadd.f32 %v1713, %v1714
  %s1717 = scalar_lea.vmem %s14, 32
  %v1718 = vld [vmem:[%s1717] sm:$0xff]
  %v1719 = vld [vmem:[%s1717 + $0x8] sm:$0xff]
  %v1720 = vld [vmem:[%s1717 + $0x10] sm:$0xff]
  %v1721 = vld [vmem:[%s1717 + $0x18] sm:$0xff]
  %v1722 = vld [vmem:[%s15 + $0x1] sm:$0x1]
  %v1723 = vperm.slane %v1722, 0
  %v1725 = vsel %vm321, %v1715, 0
  %v1728 = vsel %vm321, %v1716, 0
  %1730 = vmatpush.msra.mxu0 0.0
  %1731 = vmatpush.msra.mxu0 0.0
  %1732 = vmatpush.msra.mxu0 0.0
  %1733 = vmatpush.msra.mxu0 0.0
  %1734 = vmatpush.msra.mxu0 0.0
  %1735 = vmatpush.msra.mxu0 0.0
  %1736 = vmatpush.msra.mxu0 0.0
  %1737 = vmatpush.msra.mxu0 0.0
  %1738 = vmatpush.msra.mxu0 0.0
  %1739 = vmatpush.msra.mxu0 0.0
  %1740 = vmatpush.msra.mxu0 0.0
  %1741 = vmatpush.msra.mxu0 0.0
  %1742 = vmatpush.msra.mxu0 %v1721
  %1743 = vmatpush.msra.mxu0 %v1720
  %1744 = vmatpush.msra.mxu0 %v1719
  %1745 = vmatpush.msra.mxu0 %v1718
  %1746 = vmatmul.f32.gmra.mxu0 %v1725
  %v1747 = vpop.f32.mrf.mxu0
  %v1748 = vadd.f32 %v1723, %v1747
  %1749 = vmatmul.f32.gmra.mxu0 %v1728
  %v1750 = vpop.f32.mrf.mxu0
  %v1751 = vadd.f32 %v1723, %v1750
  %1752 = vdwg.mxu0
  %v1753 = vmul.f32 %v1748, 0.5
  %v1754 = vmul.f32 %v1751, 0.5
  %v1755 = vmul.f32 %v1748, 0.70710677
  %v1756 = vmul.f32 %v1751, 0.70710677
  %v1757 = vmul.f32 %v1755, %v1755
  %v1758 = vmin.f32 16.0, %v1757
  %v1759 = vmul.f32 %v1758, 2.1237322e-06
  %v1760 = vadd.f32 %v1759, 0.00028619796
  %v1761 = vmul.f32 %v1758, %v1760
  %v1762 = vadd.f32 %v1761, 0.0036580483
  %v1763 = vmul.f32 %v1758, %v1762
  %v1764 = vadd.f32 %v1763, 0.05243302
  %v1765 = vmul.f32 %v1758, %v1764
  %v1766 = vadd.f32 %v1765, 0.18741608
  %v1767 = vmul.f32 %v1758, %v1766
  %v1768 = vadd.f32 %v1767, 1.1283791
  %v1769 = vmul.f32 %v1755, %v1768
  %v1770 = vmul.f32 %v1758, 3.8918573e-05
  %v1771 = vadd.f32 %v1770, 0.001143296
  %v1772 = vmul.f32 %v1758, %v1771
  %v1773 = vadd.f32 %v1772, 0.014752088
  %v1774 = vmul.f32 %v1758, %v1773
  %v1775 = vadd.f32 %v1774, 0.112945676
  %v1776 = vmul.f32 %v1758, %v1775
  %v1777 = vadd.f32 %v1776, 0.4994258
  %v1778 = vmul.f32 %v1758, %v1777
  %v1779 = vadd.f32 %v1778, 1.0
  %v1780 = vrcp.pop %v1779
  %v1781 = vmul.f32 %v1779, %v1780
  %v1782 = vsub.f32 1.0, %v1781
  %v1783 = vmul.f32 %v1780, %v1782
  %v1784 = vadd.f32 %v1780, %v1783
  %vm1785 = vweird.f32 %v1779
  %vm1786 = vweird.f32 %v1780
  %vm1787 = vmor %vm1785, %vm1786
  %v1788 = vsel %vm1787, %v1780, %v1784
  %v1789 = vand.u32 2147483647, %v1779
  %vm1790 = vcmp.eq.f32.partialorder %v1789, 8.507059e+37
  %v1791 = vand.u32 %v1779, 2147483648
  %v1792 = vor.u32 1.1754944e-38, %v1791
  %v1793 = vsel %vm1790, %v1792, %v1788
  %v1794 = vmul.f32 %v1769, %v1793
  %v1795 = vmin.f32 %v1794, 1.0
  %v1796 = vmax.f32 %v1795, -1.0
  %v1797 = vmul.f32 %v1756, %v1756
  %v1798 = vmin.f32 16.0, %v1797
  %v1799 = vmul.f32 %v1798, 2.1237322e-06
  %v1800 = vadd.f32 %v1799, 0.00028619796
  %v1801 = vmul.f32 %v1798, %v1800
  %v1802 = vadd.f32 %v1801, 0.0036580483
  %v1803 = vmul.f32 %v1798, %v1802
  %v1804 = vadd.f32 %v1803, 0.05243302
  %v1805 = vmul.f32 %v1798, %v1804
  %v1806 = vadd.f32 %v1805, 0.18741608
  %v1807 = vmul.f32 %v1798, %v1806
  %v1808 = vadd.f32 %v1807, 1.1283791
  %v1809 = vmul.f32 %v1756, %v1808
  %v1810 = vmul.f32 %v1798, 3.8918573e-05
  %v1811 = vadd.f32 %v1810, 0.001143296
  %v1812 = vmul.f32 %v1798, %v1811
  %v1813 = vadd.f32 %v1812, 0.014752088
  %v1814 = vmul.f32 %v1798, %v1813
  %v1815 = vadd.f32 %v1814, 0.112945676
  %v1816 = vmul.f32 %v1798, %v1815
  %v1817 = vadd.f32 %v1816, 0.4994258
  %v1818 = vmul.f32 %v1798, %v1817
  %v1819 = vadd.f32 %v1818, 1.0
  %v1820 = vrcp.pop %v1819
  %v1821 = vmul.f32 %v1819, %v1820
  %v1822 = vsub.f32 1.0, %v1821
  %v1823 = vmul.f32 %v1820, %v1822
  %v1824 = vadd.f32 %v1820, %v1823
  %vm1825 = vweird.f32 %v1819
  %vm1826 = vweird.f32 %v1820
  %vm1827 = vmor %vm1825, %vm1826
  %v1828 = vsel %vm1827, %v1820, %v1824
  %v1829 = vand.u32 2147483647, %v1819
  %vm1830 = vcmp.eq.f32.partialorder %v1829, 8.507059e+37
  %v1831 = vand.u32 %v1819, 2147483648
  %v1832 = vor.u32 1.1754944e-38, %v1831
  %v1833 = vsel %vm1830, %v1832, %v1828
  %v1834 = vmul.f32 %v1809, %v1833
  %v1835 = vmin.f32 %v1834, 1.0
  %v1836 = vmax.f32 %v1835, -1.0
  %v1837 = vadd.f32 %v1796, 1.0
  %v1838 = vadd.f32 %v1836, 1.0
  %v1839 = vmul.f32 %v1753, %v1837
  %v1840 = vmul.f32 %v1754, %v1838
  %s1841 = scalar_lea.vmem %s16, 64
  %v1842 = vld [vmem:[%s1841] sm:$0xff]
  %v1843 = vld [vmem:[%s1841 + $0x8] sm:$0xff]
  %v1844 = vld [vmem:[%s1841 + $0x10] sm:$0xff]
  %v1845 = vld [vmem:[%s1841 + $0x18] sm:$0xff]
  %v1846 = vld [vmem:[%s1841 + $0x20] sm:$0xff]
  %v1847 = vld [vmem:[%s1841 + $0x28] sm:$0xff]
  %v1848 = vld [vmem:[%s1841 + $0x30] sm:$0xff]
  %v1849 = vld [vmem:[%s1841 + $0x38] sm:$0xff]
  %v1850 = vld [vmem:[%s17 + $0x1] sm:$0x1]
  %v1851 = vperm.slane %v1850, 0
  %v1853 = vsel %vm1075, %v1839, 0
  %v1856 = vsel %vm1075, %v1840, 0
  %1858 = vmatpush.msra.mxu0 0.0
  %1859 = vmatpush.msra.mxu0 0.0
  %1860 = vmatpush.msra.mxu0 0.0
  %1861 = vmatpush.msra.mxu0 0.0
  %1862 = vmatpush.msra.mxu0 0.0
  %1863 = vmatpush.msra.mxu0 0.0
  %1864 = vmatpush.msra.mxu0 0.0
  %1865 = vmatpush.msra.mxu0 0.0
  %1866 = vmatpush.msra.mxu0 %v1849
  %1867 = vmatpush.msra.mxu0 %v1848
  %1868 = vmatpush.msra.mxu0 %v1847
  %1869 = vmatpush.msra.mxu0 %v1846
  %1870 = vmatpush.msra.mxu0 %v1845
  %1871 = vmatpush.msra.mxu0 %v1844
  %1872 = vmatpush.msra.mxu0 %v1843
  %1873 = vmatpush.msra.mxu0 %v1842
  %1874 = vmatmul.f32.gmra.mxu0 %v1853
  %v1875 = vpop.f32.mrf.mxu0
  %v1876 = vadd.f32 %v1851, %v1875
  %1877 = vmatmul.f32.gmra.mxu0 %v1856
  %v1878 = vpop.f32.mrf.mxu0
  %1879 = vdwg.mxu0
  %v1880 = vadd.f32 %v1663, %v1876
  %v1881 = vld [vmem:[%s18] sm:$0x1]
  %v1882 = vld [vmem:[%s19] sm:$0x1]
  %v1883 = vsel %vm321, %v1880, 0.0
  %1884 = vadd.xlane.f32.xlu0 %v1883
  %v1885 = vpop.xlane.xlu0 %1884
  %v1886 = vmul.f32 %v1885, %v335
  %v1887 = vsub.f32 %v1880, %v1886
  %v1888 = vmul.f32 %v1887, %v1887
  %v1889 = vsel %vm321, %v1888, 0.0
  %1890 = vadd.xlane.f32.xlu0 %v1889
  %v1891 = vpop.xlane.xlu0 %1890
  %v1892 = vmul.f32 %v1891, %v335
  %v1893 = vadd.f32 %v1892, 1e-06
  %v1894 = vrsqrt.pop %v1893
  %v1895 = vmul.f32 %v1894, %v1893
  %v1896 = vmul.f32 %v1895, %v1894
  %v1897 = vmul.f32 0.5, %v1896
  %v1898 = vsub.f32 1.5, %v1897
  %v1899 = vmul.f32 %v1894, %v1898
  %vm1900 = vweird.f32 %v1893
  %vm1901 = vweird.f32 %v1894
  %vm1902 = vmor %vm1900, %vm1901
  %v1903 = vsel %vm1902, %v1894, %v1899
  %v1904 = vmul.f32 %v1887, %v1903
  %v1906 = vperm.slane %v1881, 0
  %v1908 = vmul.f32 %v1904, %v1906
  %v1910 = vperm.slane %v1882, 0
  %v1912 = vadd.f32 %v1908, %v1910
  %v1913 = vld [vmem:[%s20] sm:$0x1]
  %v1914 = vld [vmem:[#allocation3] sm:$0x1]
  %v1915 = vmul.f32 %v1912, %v1913
  %v1916 = vsel %vm303, %v1915, 0.0
  %1917 = vadd.xlane.f32.xlu0 %v1916
  %v1918 = vpop.xlane.xlu0 %1917
  %v1919 = vadd.f32 %v1918, %v1914
  %vm1920 = vcmask 0
  %1921 = vst.msk [vmem:[%s22] sm:$0x1] %vm1920, %v1919
  %v1923 = vperm.slane %v1913, 0
  %v1925 = vmul.f32 %v1912, %v1923
  %vm1926 = vcmask 259077
  %v1927 = vsel %vm1926, %v1925, 0.0
  %1928 = vadd.xlane.f32.xlu0 %v1927
  %v1929 = vpop.xlane.xlu0 %1928
  %v1931 = vperm.slane %v1914, 0
  %v1933 = vadd.f32 %v1929, %v1931
  %vm1934 = vcmask 5125
  %1935 = vst.msk [vmem:[%s22 - $0x4] sm:$0x20] %vm1934, %v1933
  // Predicated region
  $region90: #{vit_regressor_forward.1} parent=0 // pred_check
    _
  $region91: #{vit_regressor_forward.1} parent=0 // pred_check_branch
    %1937 = sbr.rel (0) target = $region93
  $region92: #{vit_regressor_forward.1} parent=0 // pred_region
    _
  $region93: #{vit_regressor_forward.1} parent=0 // pred_fallthru
    _
  // Predicated region
  $region94: #{vit_regressor_forward.1} parent=0 // pred_check
    _
  $region95: #{vit_regressor_forward.1} parent=0 // pred_check_branch
    %1939 = sbr.rel (0) target = $region97
  $region96: #{vit_regressor_forward.1} parent=0 // pred_region
    _
  $region97: #{vit_regressor_forward.1} parent=0 // pred_fallthru
    _

</llo_original>
